<compile_context>
chip_gen: v6e
topology: v6e:2x2x1
jax: 0.10.0
libtpu: 0.0.40
codegen_flags: <defaults>
</compile_context>

<pallas_src>
import functools

import jax
import jax.numpy as jnp
from jax.experimental import pallas as pl
from jax.experimental.pallas import tpu as pltpu

BN_EPS = 1e-3
_WPAD = 7                        # unused left cols so the interior starts at sublane offset 8
_VMEM_LIMIT = 32 * 1024 * 1024   # explicit scoped-VMEM budget (>= v5e default, <= v7x physical)


# ----------------------------- in-kernel helpers -----------------------------

def _act(y, act):
    if act == "silu":
        # y * sigmoid(y) via the tanh identity: overflow-safe for very negative
        # y and the transcendental runs on the EUP slot.
        return 0.5 * y * (1.0 + jnp.tanh(0.5 * y))
    if act == "relu":
        return jnp.maximum(y, 0.0)
    return y


def _pw(x, w_ref, b_ref, act):
    """1x1 conv (BN scale pre-folded into w) + bias + act.

    x: (H, W, Cin) f32.  Flattened to (H*W, Cin) so the MXU sees M = H*W in a
    single matmul (leading-dim merge; layout-preserving for W % 8 == 0, which
    holds for the shapes used here).  Operands in bf16, f32 accumulation.
    """
    hh, ww, cin = x.shape
    x2d = x.reshape(hh * ww, cin).astype(jnp.bfloat16)
    y = jnp.dot(x2d, w_ref[...], preferred_element_type=jnp.float32)
    y = y.reshape(hh, ww, -1) + b_ref[...].reshape(1, 1, -1)
    return _act(y, act)


def _dw3x3(pad_ref, w_ref, b_ref, act, ho, wo, c, stride):
    """3x3 depthwise conv (pad 1, given stride) reading a zero-haloed scratch.

    pad_ref: (h + 2, w + 2 + _WPAD, c); logical padded column L lives at
    physical column L + _WPAD.  Returns (ho, wo, c) f32.  For stride > 1 the
    taps are strided ref loads, so only the ho*wo output positions are ever
    multiplied (no s^2 over-compute).
    """
    acc = jnp.zeros((ho, wo, c), jnp.float32)
    for kh in range(3):
        for kw in range(3):
            c0 = _WPAD + kw
            if stride == 1:
                tap = pad_ref[kh:kh + ho, c0:c0 + wo, :]
            else:
                tap = pad_ref[pl.ds(kh, ho, stride), pl.ds(c0, wo, stride), :]
            acc = acc + tap * w_ref[kh * 3 + kw, :].reshape(1, 1, c)
    # TODO(synk): kw = 0 / 2 taps are sublane-misaligned; a pltpu.roll of one
    # aligned load could move those shifts onto the idle XLU slot.
    return _act(acc + b_ref[...].reshape(1, 1, c), act)


def _fill_padded(pad_ref, val, h, w):
    """Write `val` (h, w, c) into the scratch interior and zero ONLY the halo
    cells the 3x3 taps can read (top/bottom rows and the single left/right pad
    columns).  The _WPAD-1 leftmost columns are never read, never written."""
    wp = pad_ref.shape[1]
    c = pad_ref.shape[2]
    zrow = jnp.zeros((wp, c), jnp.float32)
    zcol = jnp.zeros((h, 1, c), jnp.float32)
    pad_ref[0, :, :] = zrow                                   # top halo row
    pad_ref[h + 1, :, :] = zrow                               # bottom halo row
    pad_ref[1:h + 1, _WPAD:_WPAD + 1, :] = zcol               # left pad column
    pad_ref[1:h + 1, _WPAD + 1 + w:_WPAD + 2 + w, :] = zcol   # right pad column
    pad_ref[1:h + 1, _WPAD + 1:_WPAD + 1 + w, :] = val        # interior (8-aligned)


# --------------------------------- kernels -----------------------------------

def _block_s1_kernel(x_ref, w3, b3, w4, b4, w5, b5, o_ref, tpad_ref, *, h, w, bf):
    x = x_ref[0]                                        # (h, w, 2*bf) f32
    # cv3 (1x1, SiLU): weight zero-padded over the x1 channel rows, so one
    # matmul over all 2*bf input channels only "sees" x2 (exact).
    t = _pw(x, w3, b3, "silu")                          # (h, w, bf)
    _fill_padded(tpad_ref, t, h, w)
    d = _dw3x3(tpad_ref, w4, b4, "silu", h, w, bf, 1)   # cv4 (dw 3x3, SiLU)
    # cv5 (1x1, SiLU): weight widened to 2*bf outputs -> branch 2 lands in the
    # upper bf lanes, lower lanes are exactly zero.
    b2w = _pw(d, w5, b5, "silu")                        # (h, w, 2*bf)
    lane = jax.lax.broadcasted_iota(jnp.int32, (1, 1, 2 * bf), 2)
    # branch 1 is the x1 passthrough (lanes < bf); single lane-dense store.
    o_ref[0] = jnp.where(lane < bf, x, b2w).astype(o_ref.dtype)


def _block_sN_kernel(x_ref, w1, b1, w2, b2, w3, b3, w4, b4, w5, b5, o_ref,
                     xpad_ref, tpad_ref, *, h, w, ho, wo, c1, bf, stride):
    x = x_ref[0]                                        # (h, w, c1) f32
    # branch 1: cv1 (dw 3x3 stride s, ReLU) -> cv2 (1x1, SiLU), at (ho, wo).
    _fill_padded(xpad_ref, x, h, w)
    d1 = _dw3x3(xpad_ref, w1, b1, "relu", ho, wo, c1, stride)
    br1 = _pw(d1, w2, b2, "silu")                       # (ho, wo, 2*bf), hi lanes exactly 0
    # branch 2: cv3 (1x1, SiLU, full res) -> cv4 (dw 3x3 stride s) -> cv5.
    t = _pw(x, w3, b3, "silu")                          # (h, w, bf)
    _fill_padded(tpad_ref, t, h, w)
    d2 = _dw3x3(tpad_ref, w4, b4, "silu", ho, wo, bf, stride)
    br2 = _pw(d2, w5, b5, "silu")                       # (ho, wo, 2*bf), lo lanes exactly 0
    o_ref[0] = (br1 + br2).astype(o_ref.dtype)          # sum == concat; single full store


# -------------------------------- wrappers ------------------------------------

def _const_spec(arr):
    nd = arr.ndim
    return pl.BlockSpec(arr.shape, lambda i: (0,) * nd)


def _compiler_params():
    return pltpu.CompilerParams(dimension_semantics=("parallel",),
                                vmem_limit_bytes=_VMEM_LIMIT)


def _run_block_s1(x_nhwc, p):
    n, h, w, c1 = x_nhwc.shape
    bf = c1 // 2
    args = (p["w3"], p["b3"], p["w4"], p["b4"], p["w5"], p["b5"])
    # TODO(synk): add a halo'd row-band grid axis for v7x dual-TC utilization at
    # small batch and for VMEM-bounded large resolutions.
    return pl.pallas_call(
        functools.partial(_block_s1_kernel, h=h, w=w, bf=bf),
        out_shape=jax.ShapeDtypeStruct((n, h, w, 2 * bf), x_nhwc.dtype),
        grid=(n,),
        in_specs=[pl.BlockSpec((1, h, w, c1), lambda i: (i, 0, 0, 0))]
                 + [_const_spec(a) for a in args],
        out_specs=pl.BlockSpec((1, h, w, 2 * bf), lambda i: (i, 0, 0, 0)),
        scratch_shapes=[pltpu.VMEM((h + 2, w + 2 + _WPAD, bf), jnp.float32)],
        compiler_params=_compiler_params(),
    )(x_nhwc, *args)


def _run_block_sN(x_nhwc, p, stride):
    n, h, w, c1 = x_nhwc.shape
    bf = p["w3"].shape[1]
    ho = (h - 1) // stride + 1
    wo = (w - 1) // stride + 1
    args = (p["w1"], p["b1"], p["w2"], p["b2"], p["w3"], p["b3"],
            p["w4"], p["b4"], p["w5"], p["b5"])
    return pl.pallas_call(
        functools.partial(_block_sN_kernel, h=h, w=w, ho=ho, wo=wo,
                          c1=c1, bf=bf, stride=stride),
        out_shape=jax.ShapeDtypeStruct((n, ho, wo, 2 * bf), x_nhwc.dtype),
        grid=(n,),
        in_specs=[pl.BlockSpec((1, h, w, c1), lambda i: (i, 0, 0, 0))]
                 + [_const_spec(a) for a in args],
        out_specs=pl.BlockSpec((1, ho, wo, 2 * bf), lambda i: (i, 0, 0, 0)),
        scratch_shapes=[pltpu.VMEM((h + 2, w + 2 + _WPAD, c1), jnp.float32),
                        pltpu.VMEM((h + 2, w + 2 + _WPAD, bf), jnp.float32)],
        compiler_params=_compiler_params(),
    )(x_nhwc, *args)


# --------------------------- parameter construction ---------------------------

def _fold_bn(key, cout):
    kg, kb, km, kv = jax.random.split(key, 4)
    gamma = 1.0 + 0.1 * jax.random.normal(kg, (cout,), jnp.float32)
    beta = 0.1 * jax.random.normal(kb, (cout,), jnp.float32)
    mean = 0.1 * jax.random.normal(km, (cout,), jnp.float32)
    var = 0.5 + 0.1 * jnp.abs(jax.random.normal(kv, (cout,), jnp.float32))
    scale = gamma / jnp.sqrt(var + BN_EPS)
    bias = beta - mean * scale
    return scale, bias


def make_pw(key, cin, cout):
    """1x1 Conv + BN (eval) folded: bf16 weight (cin, cout), f32 bias (1, cout)."""
    kw, kb = jax.random.split(key)
    w = 0.1 * jax.random.normal(kw, (cin, cout), jnp.float32)
    scale, bias = _fold_bn(kb, cout)
    return dict(w=(w * scale[None, :]).astype(jnp.bfloat16),
                b=bias.reshape(1, cout))


def make_dw(key, c):
    """3x3 depthwise Conv + BN (eval) folded: f32 taps (9, c) and bias (1, c)."""
    kw, kb = jax.random.split(key)
    w = 0.1 * jax.random.normal(kw, (9, c), jnp.float32)
    scale, bias = _fold_bn(kb, c)
    return dict(w=w * scale[None, :], b=bias.reshape(1, c))


# -------------------------------- the module ----------------------------------

class ShuffleNetV2Pallas:
    """ShuffleNetV2 unit (eval mode), matching the PyTorch reference forward."""

    def __init__(self, c1, c2, stride, key):
        if not 1 <= stride <= 3:
            raise ValueError("illegal stride value")
        self.stride = stride
        bf = c2 // 2
        self.branch = bf
        assert stride != 1 or c1 == bf << 1
        keys = jax.random.split(key, 5)
        if stride > 1:
            self.cv1 = make_dw(keys[0], c1)        # dw 3x3 stride s, ReLU
            self.cv2 = make_pw(keys[1], c1, bf)    # 1x1, SiLU
        else:
            self.cv1 = None
            self.cv2 = None
        cv3_cin = c1 if stride > 1 else bf
        self.cv3 = make_pw(keys[2], cv3_cin, bf)   # 1x1, SiLU
        self.cv4 = make_dw(keys[3], bf)            # dw 3x3 stride s, SiLU
        self.cv5 = make_pw(keys[4], bf, bf)        # 1x1, SiLU

        # Kernel-side weight repacks (exact zero padding, numerically neutral).
        # cv5 / cv2 write directly into their half of the 2*bf lane-dense output.
        # TODO(synk): for wide stages (2*bf > 128) this doubles MXU N/K passes;
        # switch to lane-sliced stores / x2 slicing there.
        zw = jnp.zeros((bf, bf), jnp.bfloat16)
        zb = jnp.zeros((1, bf), jnp.float32)
        self.w5_wide = jnp.concatenate([zw, self.cv5["w"]], axis=1)   # branch 2 -> hi lanes
        self.b5_wide = jnp.concatenate([zb, self.cv5["b"]], axis=1)
        if stride > 1:
            zw2 = jnp.zeros((c1, bf), jnp.bfloat16)
            self.w2_wide = jnp.concatenate([self.cv2["w"], zw2], axis=1)  # branch 1 -> lo lanes
            self.b2_wide = jnp.concatenate([self.cv2["b"], zb], axis=1)
        else:
            # cv3 only consumes the x2 half; zero-pad its input rows so the
            # fused kernel can matmul against the full 2*bf channel dim.
            self.cv3_wfull = jnp.concatenate(
                [jnp.zeros((bf, bf), jnp.bfloat16), self.cv3["w"]], axis=0)

    def __call__(self, x_nchw):
        x = jnp.transpose(x_nchw, (0, 2, 3, 1))    # NCHW -> NHWC (module boundary only)
        n = x.shape[0]
        bf = self.branch
        if self.stride == 1:
            p = dict(w3=self.cv3_wfull, b3=self.cv3["b"],
                     w4=self.cv4["w"], b4=self.cv4["b"],
                     w5=self.w5_wide, b5=self.b5_wide)
            out = _run_block_s1(x, p)              # (n, h, w, 2*bf)
        else:
            p = dict(w1=self.cv1["w"], b1=self.cv1["b"],
                     w2=self.w2_wide, b2=self.b2_wide,
                     w3=self.cv3["w"], b3=self.cv3["b"],
                     w4=self.cv4["w"], b4=self.cv4["b"],
                     w5=self.w5_wide, b5=self.b5_wide)
            out = _run_block_sN(x, p, self.stride)  # (n, ho, wo, 2*bf), already decimated
        _, ho, wo, _ = out.shape
        # concat + channel_shuffle(groups=2) fold into this single transpose:
        # NCHW channel 2*m + g  ==  NHWC channel g*bf + m (branch g, feature m).
        out = out.reshape(n, ho, wo, 2, bf)
        return jnp.transpose(out, (0, 4, 3, 1, 2)).reshape(n, 2 * bf, ho, wo)


# ------------------------ pure-JAX reference (for checking) -------------------

def _ref_act(y, act):
    if act == "silu":
        return y * jax.nn.sigmoid(y)
    if act == "relu":
        return jnp.maximum(y, 0.0)
    return y


def _ref_pw(x, p, act):
    # Mirrors the kernel's intended numerics: bf16 MXU operands, f32 accumulation.
    y = jnp.einsum("nhwc,co->nhwo", x.astype(jnp.bfloat16), p["w"],
                   preferred_element_type=jnp.float32) + p["b"][0]
    return _ref_act(y, act)


def _ref_dw(x, p, act, stride):
    c = x.shape[-1]
    w = p["w"].reshape(3, 3, c)[:, :, None, :]
    y = jax.lax.conv_general_dilated(
        x, w, window_strides=(stride, stride), padding=((1, 1), (1, 1)),
        dimension_numbers=("NHWC", "HWIO", "NHWC"), feature_group_count=c)
    return _ref_act(y + p["b"][0], act)


def reference_forward(model, x_nchw):
    x = jnp.transpose(x_nchw, (0, 2, 3, 1))
    if model.stride == 1:
        bf = model.branch
        x1, x2 = x[..., :bf], x[..., bf:]
        b2 = _ref_pw(x2, model.cv3, "silu")
        b2 = _ref_dw(b2, model.cv4, "silu", 1)
        b2 = _ref_pw(b2, model.cv5, "silu")
        out = jnp.concatenate([x1, b2], axis=-1)
    else:
        b1 = _ref_dw(x, model.cv1, "relu", model.stride)
        b1 = _ref_pw(b1, model.cv2, "silu")
        b2 = _ref_pw(x, model.cv3, "silu")
        b2 = _ref_dw(b2, model.cv4, "silu", model.stride)
        b2 = _ref_pw(b2, model.cv5, "silu")
        out = jnp.concatenate([b1, b2], axis=-1)
    n, h, w, c = out.shape
    out = out.reshape(n, h, w, 2, c // 2)
    out = jnp.transpose(out, (0, 1, 2, 4, 3)).reshape(n, h, w, c)
    return jnp.transpose(out, (0, 3, 1, 2))


if __name__ == "__main__":
    key = jax.random.PRNGKey(0)
    kx, kp1, kp2 = jax.random.split(key, 3)

    n, h, w = 2, 16, 16
    x = jax.random.normal(kx, (n, 16, h, w), jnp.float32)   # NCHW, like PyTorch

    # stride = 1 unit (requires c1 == 2 * (c2 // 2))
    model1 = ShuffleNetV2Pallas(16, 16, 1, kp1)
    out1 = jax.block_until_ready(model1(x))
    ref1 = jax.block_until_ready(reference_forward(model1, x))
    assert out1.shape == (n, 16, h, w), out1.shape
    err1 = float(jnp.max(jnp.abs(out1 - ref1)))
    assert err1 < 3e-3, f"stride=1 mismatch vs reference: {err1}"

    # stride = 2 (downsampling) unit
    model2 = ShuffleNetV2Pallas(16, 32, 2, kp2)
    out2 = jax.block_until_ready(model2(x))
    ref2 = jax.block_until_ready(reference_forward(model2, x))
    assert out2.shape == (n, 32, h // 2, w // 2), out2.shape
    err2 = float(jnp.max(jnp.abs(out2 - ref2)))
    assert err2 < 3e-3, f"stride=2 mismatch vs reference: {err2}"

    print("KERNEL_OK")
</pallas_src>

<mosaic_0001>
module attributes {stable_mosaic.version = 11 : i64} {
  func.func @_block_s1_kernel(%arg0: i32, %arg1: memref<1x16x16x16xf32, #tpu.memory_space<vmem>>, %arg2: memref<16x8xbf16, #tpu.memory_space<vmem>>, %arg3: memref<1x8xf32, #tpu.memory_space<vmem>>, %arg4: memref<9x8xf32, #tpu.memory_space<vmem>>, %arg5: memref<1x8xf32, #tpu.memory_space<vmem>>, %arg6: memref<8x16xbf16, #tpu.memory_space<vmem>>, %arg7: memref<1x16xf32, #tpu.memory_space<vmem>>, %arg8: memref<1x16x16x16xf32, #tpu.memory_space<vmem>>, %arg9: memref<18x25x8xf32, #tpu.memory_space<vmem>>) attributes {dimension_semantics = [#tpu.dimension_semantics<parallel>], iteration_bounds = array<i64: 2>, scalar_prefetch = 0 : i64, scratch_operands = 1 : i64, tpu.core_type = #tpu.core_type<tc>, window_params = [{transform_indices = @transform_0, window_bounds = array<i64: 1, 16, 16, 16>}, {pipeline_mode = #tpu.pipeline_mode<synchronous>, transform_indices = @transform_1, window_bounds = array<i64: 16, 8>}, {pipeline_mode = #tpu.pipeline_mode<synchronous>, transform_indices = @transform_2, window_bounds = array<i64: 1, 8>}, {pipeline_mode = #tpu.pipeline_mode<synchronous>, transform_indices = @transform_3, window_bounds = array<i64: 9, 8>}, {pipeline_mode = #tpu.pipeline_mode<synchronous>, transform_indices = @transform_4, window_bounds = array<i64: 1, 8>}, {pipeline_mode = #tpu.pipeline_mode<synchronous>, transform_indices = @transform_5, window_bounds = array<i64: 8, 16>}, {pipeline_mode = #tpu.pipeline_mode<synchronous>, transform_indices = @transform_6, window_bounds = array<i64: 1, 16>}, {transform_indices = @transform_7, window_bounds = array<i64: 1, 16, 16, 16>}]} {
    %c0 = arith.constant 0 : index
    %c0_0 = arith.constant 0 : index
    %c0_1 = arith.constant 0 : index
    %c0_2 = arith.constant 0 : index
    %0 = vector.load %arg1[%c0, %c0_0, %c0_1, %c0_2] : memref<1x16x16x16xf32, #tpu.memory_space<vmem>>, vector<1x16x16x16xf32>
    %1 = vector.shape_cast %0 : vector<1x16x16x16xf32> to vector<16x16x16xf32>
    %2 = vector.shape_cast %1 : vector<16x16x16xf32> to vector<256x16xf32>
    %3 = arith.truncf %2 : vector<256x16xf32> to vector<256x16xbf16>
    %c0_3 = arith.constant 0 : index
    %c0_4 = arith.constant 0 : index
    %4 = vector.load %arg2[%c0_3, %c0_4] : memref<16x8xbf16, #tpu.memory_space<vmem>>, vector<16x8xbf16>
    %cst = arith.constant dense<0.000000e+00> : vector<256x8xf32>
    %5 = tpu.matmul %3, %4, %cst {dimension_numbers = #tpu.dot_dimension_numbers<[1], [0], [0], [1], [0, 0, 1, 1], [], []>} : vector<256x16xbf16>, vector<16x8xbf16>, vector<256x8xf32> -> vector<256x8xf32>
    %6 = vector.shape_cast %5 : vector<256x8xf32> to vector<16x16x8xf32>
    %c0_5 = arith.constant 0 : index
    %c0_6 = arith.constant 0 : index
    %7 = vector.load %arg3[%c0_5, %c0_6] : memref<1x8xf32, #tpu.memory_space<vmem>>, vector<1x8xf32>
    %8 = vector.shape_cast %7 : vector<1x8xf32> to vector<1x1x8xf32>
    %9 = vector.broadcast %8 : vector<1x1x8xf32> to vector<16x16x8xf32>
    %10 = arith.addf %6, %9 : vector<16x16x8xf32>
    %cst_7 = arith.constant 5.000000e-01 : f32
    %11 = vector.broadcast %cst_7 : f32 to vector<16x16x8xf32>
    %12 = arith.mulf %11, %10 : vector<16x16x8xf32>
    %cst_8 = arith.constant 5.000000e-01 : f32
    %13 = vector.broadcast %cst_8 : f32 to vector<16x16x8xf32>
    %14 = arith.mulf %13, %10 : vector<16x16x8xf32>
    %15 = math.tanh %14 : vector<16x16x8xf32>
    %cst_9 = arith.constant 1.000000e+00 : f32
    %16 = vector.broadcast %cst_9 : f32 to vector<16x16x8xf32>
    %17 = arith.addf %16, %15 : vector<16x16x8xf32>
    %18 = arith.mulf %12, %17 : vector<16x16x8xf32>
    %cst_10 = arith.constant 0.000000e+00 : f32
    %19 = vector.broadcast %cst_10 : f32 to vector<25x8xf32>
    %cst_11 = arith.constant 0.000000e+00 : f32
    %20 = vector.broadcast %cst_11 : f32 to vector<16x1x8xf32>
    %c0_12 = arith.constant 0 : index
    %c0_13 = arith.constant 0 : index
    %c0_14 = arith.constant 0 : index
    %21 = vector.load %arg9[%c0_12, %c0_13, %c0_14] : memref<18x25x8xf32, #tpu.memory_space<vmem>>, vector<1x25x8xf32>
    %22 = vector.shape_cast %21 : vector<1x25x8xf32> to vector<25x8xf32>
    %23 = vector.shape_cast %19 : vector<25x8xf32> to vector<1x25x8xf32>
    tpu.vector_store %arg9[%c0_12, %c0_13, %c0_14], %23 {strides = array<i32>} : memref<18x25x8xf32, #tpu.memory_space<vmem>>, vector<1x25x8xf32>,
    %c17 = arith.constant 17 : index
    %c0_15 = arith.constant 0 : index
    %c0_16 = arith.constant 0 : index
    %24 = vector.load %arg9[%c17, %c0_15, %c0_16] : memref<18x25x8xf32, #tpu.memory_space<vmem>>, vector<1x25x8xf32>
    %25 = vector.shape_cast %24 : vector<1x25x8xf32> to vector<25x8xf32>
    %26 = vector.shape_cast %19 : vector<25x8xf32> to vector<1x25x8xf32>
    tpu.vector_store %arg9[%c17, %c0_15, %c0_16], %26 {strides = array<i32>} : memref<18x25x8xf32, #tpu.memory_space<vmem>>, vector<1x25x8xf32>,
    %c1 = arith.constant 1 : index
    %c7 = arith.constant 7 : index
    %c0_17 = arith.constant 0 : index
    %27 = vector.load %arg9[%c1, %c7, %c0_17] : memref<18x25x8xf32, #tpu.memory_space<vmem>>, vector<16x1x8xf32>
    tpu.vector_store %arg9[%c1, %c7, %c0_17], %20 {strides = array<i32>} : memref<18x25x8xf32, #tpu.memory_space<vmem>>, vector<16x1x8xf32>,
    %c1_18 = arith.constant 1 : index
    %c24 = arith.constant 24 : index
    %c0_19 = arith.constant 0 : index
    %28 = vector.load %arg9[%c1_18, %c24, %c0_19] : memref<18x25x8xf32, #tpu.memory_space<vmem>>, vector<16x1x8xf32>
    tpu.vector_store %arg9[%c1_18, %c24, %c0_19], %20 {strides = array<i32>} : memref<18x25x8xf32, #tpu.memory_space<vmem>>, vector<16x1x8xf32>,
    %c1_20 = arith.constant 1 : index
    %c8 = arith.constant 8 : index
    %c0_21 = arith.constant 0 : index
    %29 = vector.load %arg9[%c1_20, %c8, %c0_21] : memref<18x25x8xf32, #tpu.memory_space<vmem>>, vector<16x16x8xf32>
    tpu.vector_store %arg9[%c1_20, %c8, %c0_21], %18 {strides = array<i32>} : memref<18x25x8xf32, #tpu.memory_space<vmem>>, vector<16x16x8xf32>,
    %cst_22 = arith.constant 0.000000e+00 : f32
    %30 = vector.broadcast %cst_22 : f32 to vector<16x16x8xf32>
    %c0_23 = arith.constant 0 : index
    %c7_24 = arith.constant 7 : index
    %c0_25 = arith.constant 0 : index
    %31 = vector.load %arg9[%c0_23, %c7_24, %c0_25] : memref<18x25x8xf32, #tpu.memory_space<vmem>>, vector<16x16x8xf32>
    %c0_26 = arith.constant 0 : index
    %c0_27 = arith.constant 0 : index
    %32 = vector.load %arg4[%c0_26, %c0_27] : memref<9x8xf32, #tpu.memory_space<vmem>>, vector<1x8xf32>
    %33 = vector.shape_cast %32 : vector<1x8xf32> to vector<8xf32>
    %34 = vector.shape_cast %33 : vector<8xf32> to vector<1x1x8xf32>
    %35 = vector.broadcast %34 : vector<1x1x8xf32> to vector<16x16x8xf32>
    %36 = arith.mulf %31, %35 : vector<16x16x8xf32>
    %37 = arith.addf %30, %36 : vector<16x16x8xf32>
    %c0_28 = arith.constant 0 : index
    %c8_29 = arith.constant 8 : index
    %c0_30 = arith.constant 0 : index
    %38 = vector.load %arg9[%c0_28, %c8_29, %c0_30] : memref<18x25x8xf32, #tpu.memory_space<vmem>>, vector<16x16x8xf32>
    %c1_31 = arith.constant 1 : index
    %c0_32 = arith.constant 0 : index
    %39 = vector.load %arg4[%c1_31, %c0_32] : memref<9x8xf32, #tpu.memory_space<vmem>>, vector<1x8xf32>
    %40 = vector.shape_cast %39 : vector<1x8xf32> to vector<8xf32>
    %41 = vector.shape_cast %40 : vector<8xf32> to vector<1x1x8xf32>
    %42 = vector.broadcast %41 : vector<1x1x8xf32> to vector<16x16x8xf32>
    %43 = arith.mulf %38, %42 : vector<16x16x8xf32>
    %44 = arith.addf %37, %43 : vector<16x16x8xf32>
    %c0_33 = arith.constant 0 : index
    %c9 = arith.constant 9 : index
    %c0_34 = arith.constant 0 : index
    %45 = vector.load %arg9[%c0_33, %c9, %c0_34] : memref<18x25x8xf32, #tpu.memory_space<vmem>>, vector<16x16x8xf32>
    %c2 = arith.constant 2 : index
    %c0_35 = arith.constant 0 : index
    %46 = vector.load %arg4[%c2, %c0_35] : memref<9x8xf32, #tpu.memory_space<vmem>>, vector<1x8xf32>
    %47 = vector.shape_cast %46 : vector<1x8xf32> to vector<8xf32>
    %48 = vector.shape_cast %47 : vector<8xf32> to vector<1x1x8xf32>
    %49 = vector.broadcast %48 : vector<1x1x8xf32> to vector<16x16x8xf32>
    %50 = arith.mulf %45, %49 : vector<16x16x8xf32>
    %51 = arith.addf %44, %50 : vector<16x16x8xf32>
    %c1_36 = arith.constant 1 : index
    %c7_37 = arith.constant 7 : index
    %c0_38 = arith.constant 0 : index
    %52 = vector.load %arg9[%c1_36, %c7_37, %c0_38] : memref<18x25x8xf32, #tpu.memory_space<vmem>>, vector<16x16x8xf32>
    %c3 = arith.constant 3 : index
    %c0_39 = arith.constant 0 : index
    %53 = vector.load %arg4[%c3, %c0_39] : memref<9x8xf32, #tpu.memory_space<vmem>>, vector<1x8xf32>
    %54 = vector.shape_cast %53 : vector<1x8xf32> to vector<8xf32>
    %55 = vector.shape_cast %54 : vector<8xf32> to vector<1x1x8xf32>
    %56 = vector.broadcast %55 : vector<1x1x8xf32> to vector<16x16x8xf32>
    %57 = arith.mulf %52, %56 : vector<16x16x8xf32>
    %58 = arith.addf %51, %57 : vector<16x16x8xf32>
    %c1_40 = arith.constant 1 : index
    %c8_41 = arith.constant 8 : index
    %c0_42 = arith.constant 0 : index
    %59 = vector.load %arg9[%c1_40, %c8_41, %c0_42] : memref<18x25x8xf32, #tpu.memory_space<vmem>>, vector<16x16x8xf32>
    %c4 = arith.constant 4 : index
    %c0_43 = arith.constant 0 : index
    %60 = vector.load %arg4[%c4, %c0_43] : memref<9x8xf32, #tpu.memory_space<vmem>>, vector<1x8xf32>
    %61 = vector.shape_cast %60 : vector<1x8xf32> to vector<8xf32>
    %62 = vector.shape_cast %61 : vector<8xf32> to vector<1x1x8xf32>
    %63 = vector.broadcast %62 : vector<1x1x8xf32> to vector<16x16x8xf32>
    %64 = arith.mulf %59, %63 : vector<16x16x8xf32>
    %65 = arith.addf %58, %64 : vector<16x16x8xf32>
    %c1_44 = arith.constant 1 : index
    %c9_45 = arith.constant 9 : index
    %c0_46 = arith.constant 0 : index
    %66 = vector.load %arg9[%c1_44, %c9_45, %c0_46] : memref<18x25x8xf32, #tpu.memory_space<vmem>>, vector<16x16x8xf32>
    %c5 = arith.constant 5 : index
    %c0_47 = arith.constant 0 : index
    %67 = vector.load %arg4[%c5, %c0_47] : memref<9x8xf32, #tpu.memory_space<vmem>>, vector<1x8xf32>
    %68 = vector.shape_cast %67 : vector<1x8xf32> to vector<8xf32>
    %69 = vector.shape_cast %68 : vector<8xf32> to vector<1x1x8xf32>
    %70 = vector.broadcast %69 : vector<1x1x8xf32> to vector<16x16x8xf32>
    %71 = arith.mulf %66, %70 : vector<16x16x8xf32>
    %72 = arith.addf %65, %71 : vector<16x16x8xf32>
    %c2_48 = arith.constant 2 : index
    %c7_49 = arith.constant 7 : index
    %c0_50 = arith.constant 0 : index
    %73 = vector.load %arg9[%c2_48, %c7_49, %c0_50] : memref<18x25x8xf32, #tpu.memory_space<vmem>>, vector<16x16x8xf32>
    %c6 = arith.constant 6 : index
    %c0_51 = arith.constant 0 : index
    %74 = vector.load %arg4[%c6, %c0_51] : memref<9x8xf32, #tpu.memory_space<vmem>>, vector<1x8xf32>
    %75 = vector.shape_cast %74 : vector<1x8xf32> to vector<8xf32>
    %76 = vector.shape_cast %75 : vector<8xf32> to vector<1x1x8xf32>
    %77 = vector.broadcast %76 : vector<1x1x8xf32> to vector<16x16x8xf32>
    %78 = arith.mulf %73, %77 : vector<16x16x8xf32>
    %79 = arith.addf %72, %78 : vector<16x16x8xf32>
    %c2_52 = arith.constant 2 : index
    %c8_53 = arith.constant 8 : index
    %c0_54 = arith.constant 0 : index
    %80 = vector.load %arg9[%c2_52, %c8_53, %c0_54] : memref<18x25x8xf32, #tpu.memory_space<vmem>>, vector<16x16x8xf32>
    %c7_55 = arith.constant 7 : index
    %c0_56 = arith.constant 0 : index
    %81 = vector.load %arg4[%c7_55, %c0_56] : memref<9x8xf32, #tpu.memory_space<vmem>>, vector<1x8xf32>
    %82 = vector.shape_cast %81 : vector<1x8xf32> to vector<8xf32>
    %83 = vector.shape_cast %82 : vector<8xf32> to vector<1x1x8xf32>
    %84 = vector.broadcast %83 : vector<1x1x8xf32> to vector<16x16x8xf32>
    %85 = arith.mulf %80, %84 : vector<16x16x8xf32>
    %86 = arith.addf %79, %85 : vector<16x16x8xf32>
    %c2_57 = arith.constant 2 : index
    %c9_58 = arith.constant 9 : index
    %c0_59 = arith.constant 0 : index
    %87 = vector.load %arg9[%c2_57, %c9_58, %c0_59] : memref<18x25x8xf32, #tpu.memory_space<vmem>>, vector<16x16x8xf32>
    %c8_60 = arith.constant 8 : index
    %c0_61 = arith.constant 0 : index
    %88 = vector.load %arg4[%c8_60, %c0_61] : memref<9x8xf32, #tpu.memory_space<vmem>>, vector<1x8xf32>
    %89 = vector.shape_cast %88 : vector<1x8xf32> to vector<8xf32>
    %90 = vector.shape_cast %89 : vector<8xf32> to vector<1x1x8xf32>
    %91 = vector.broadcast %90 : vector<1x1x8xf32> to vector<16x16x8xf32>
    %92 = arith.mulf %87, %91 : vector<16x16x8xf32>
    %93 = arith.addf %86, %92 : vector<16x16x8xf32>
    %c0_62 = arith.constant 0 : index
    %c0_63 = arith.constant 0 : index
    %94 = vector.load %arg5[%c0_62, %c0_63] : memref<1x8xf32, #tpu.memory_space<vmem>>, vector<1x8xf32>
    %95 = vector.shape_cast %94 : vector<1x8xf32> to vector<1x1x8xf32>
    %96 = vector.broadcast %95 : vector<1x1x8xf32> to vector<16x16x8xf32>
    %97 = arith.addf %93, %96 : vector<16x16x8xf32>
    %cst_64 = arith.constant 5.000000e-01 : f32
    %98 = vector.broadcast %cst_64 : f32 to vector<16x16x8xf32>
    %99 = arith.mulf %98, %97 : vector<16x16x8xf32>
    %cst_65 = arith.constant 5.000000e-01 : f32
    %100 = vector.broadcast %cst_65 : f32 to vector<16x16x8xf32>
    %101 = arith.mulf %100, %97 : vector<16x16x8xf32>
    %102 = math.tanh %101 : vector<16x16x8xf32>
    %cst_66 = arith.constant 1.000000e+00 : f32
    %103 = vector.broadcast %cst_66 : f32 to vector<16x16x8xf32>
    %104 = arith.addf %103, %102 : vector<16x16x8xf32>
    %105 = arith.mulf %99, %104 : vector<16x16x8xf32>
    %106 = vector.shape_cast %105 : vector<16x16x8xf32> to vector<256x8xf32>
    %107 = arith.truncf %106 : vector<256x8xf32> to vector<256x8xbf16>
    %c0_67 = arith.constant 0 : index
    %c0_68 = arith.constant 0 : index
    %108 = vector.load %arg6[%c0_67, %c0_68] : memref<8x16xbf16, #tpu.memory_space<vmem>>, vector<8x16xbf16>
    %cst_69 = arith.constant dense<0.000000e+00> : vector<256x16xf32>
    %109 = tpu.matmul %107, %108, %cst_69 {dimension_numbers = #tpu.dot_dimension_numbers<[1], [0], [0], [1], [0, 0, 1, 1], [], []>} : vector<256x8xbf16>, vector<8x16xbf16>, vector<256x16xf32> -> vector<256x16xf32>
    %110 = vector.shape_cast %109 : vector<256x16xf32> to vector<16x16x16xf32>
    %c0_70 = arith.constant 0 : index
    %c0_71 = arith.constant 0 : index
    %111 = vector.load %arg7[%c0_70, %c0_71] : memref<1x16xf32, #tpu.memory_space<vmem>>, vector<1x16xf32>
    %112 = vector.shape_cast %111 : vector<1x16xf32> to vector<1x1x16xf32>
    %113 = vector.broadcast %112 : vector<1x1x16xf32> to vector<16x16x16xf32>
    %114 = arith.addf %110, %113 : vector<16x16x16xf32>
    %cst_72 = arith.constant 5.000000e-01 : f32
    %115 = vector.broadcast %cst_72 : f32 to vector<16x16x16xf32>
    %116 = arith.mulf %115, %114 : vector<16x16x16xf32>
    %cst_73 = arith.constant 5.000000e-01 : f32
    %117 = vector.broadcast %cst_73 : f32 to vector<16x16x16xf32>
    %118 = arith.mulf %117, %114 : vector<16x16x16xf32>
    %119 = math.tanh %118 : vector<16x16x16xf32>
    %cst_74 = arith.constant 1.000000e+00 : f32
    %120 = vector.broadcast %cst_74 : f32 to vector<16x16x16xf32>
    %121 = arith.addf %120, %119 : vector<16x16x16xf32>
    %122 = arith.mulf %116, %121 : vector<16x16x16xf32>
    %123 = tpu.iota {dimensions = array<i32: 2>} : vector<1x1x16xi32>
    %c8_i32 = arith.constant 8 : i32
    %124 = vector.broadcast %c8_i32 : i32 to vector<1x1x16xi32>
    %125 = arith.cmpi slt, %123, %124 : vector<1x1x16xi32>
    %126 = vector.shape_cast %125 : vector<1x1x16xi1> to vector<1x1x16xi1>
    %127 = vector.broadcast %126 : vector<1x1x16xi1> to vector<16x16x16xi1>
    %128 = arith.select %127, %1, %122 : vector<16x16x16xi1>, vector<16x16x16xf32>
    %c0_75 = arith.constant 0 : index
    %c0_76 = arith.constant 0 : index
    %c0_77 = arith.constant 0 : index
    %c0_78 = arith.constant 0 : index
    %129 = vector.load %arg8[%c0_75, %c0_76, %c0_77, %c0_78] : memref<1x16x16x16xf32, #tpu.memory_space<vmem>>, vector<1x16x16x16xf32>
    %130 = vector.shape_cast %129 : vector<1x16x16x16xf32> to vector<16x16x16xf32>
    %131 = vector.shape_cast %128 : vector<16x16x16xf32> to vector<1x16x16x16xf32>
    tpu.vector_store %arg8[%c0_75, %c0_76, %c0_77, %c0_78], %131 {strides = array<i32>} : memref<1x16x16x16xf32, #tpu.memory_space<vmem>>, vector<1x16x16x16xf32>,
    return
  }
  func.func @transform_0(%arg0: i32) -> (i32, i32, i32, i32) {
    %c0_i32 = arith.constant 0 : i32
    %c0_i32_0 = arith.constant 0 : i32
    %c0_i32_1 = arith.constant 0 : i32
    %c0_i32_2 = arith.constant 0 : i32
    return %arg0, %c0_i32, %c0_i32_0, %c0_i32_1 : i32, i32, i32, i32
  }
  func.func @transform_1(%arg0: i32) -> (i32, i32) {
    %c0_i32 = arith.constant 0 : i32
    %c0_i32_0 = arith.constant 0 : i32
    %c0_i32_1 = arith.constant 0 : i32
    return %c0_i32, %c0_i32_0 : i32, i32
  }
  func.func @transform_2(%arg0: i32) -> (i32, i32) {
    %c0_i32 = arith.constant 0 : i32
    %c0_i32_0 = arith.constant 0 : i32
    %c0_i32_1 = arith.constant 0 : i32
    return %c0_i32, %c0_i32_0 : i32, i32
  }
  func.func @transform_3(%arg0: i32) -> (i32, i32) {
    %c0_i32 = arith.constant 0 : i32
    %c0_i32_0 = arith.constant 0 : i32
    %c0_i32_1 = arith.constant 0 : i32
    return %c0_i32, %c0_i32_0 : i32, i32
  }
  func.func @transform_4(%arg0: i32) -> (i32, i32) {
    %c0_i32 = arith.constant 0 : i32
    %c0_i32_0 = arith.constant 0 : i32
    %c0_i32_1 = arith.constant 0 : i32
    return %c0_i32, %c0_i32_0 : i32, i32
  }
  func.func @transform_5(%arg0: i32) -> (i32, i32) {
    %c0_i32 = arith.constant 0 : i32
    %c0_i32_0 = arith.constant 0 : i32
    %c0_i32_1 = arith.constant 0 : i32
    return %c0_i32, %c0_i32_0 : i32, i32
  }
  func.func @transform_6(%arg0: i32) -> (i32, i32) {
    %c0_i32 = arith.constant 0 : i32
    %c0_i32_0 = arith.constant 0 : i32
    %c0_i32_1 = arith.constant 0 : i32
    return %c0_i32, %c0_i32_0 : i32, i32
  }
  func.func @transform_7(%arg0: i32) -> (i32, i32, i32, i32) {
    %c0_i32 = arith.constant 0 : i32
    %c0_i32_0 = arith.constant 0 : i32
    %c0_i32_1 = arith.constant 0 : i32
    %c0_i32_2 = arith.constant 0 : i32
    return %arg0, %c0_i32, %c0_i32_0, %c0_i32_1 : i32, i32, i32, i32
  }
}

</mosaic_0001>

<llo_original>
// kernel: tpu_custom_call.1
$region0: #{tpu_custom_call.1}
  #allocation0 [shape = 'u32[]', space=smem, size = 0x4, offset = 0x4, fixed_abs, tag = 'smem constant byte address 0x4 - core index']
  #allocation1 [shape = 'u32[144,128]{1,0:T(1,128)}', space=vmem, size = 0x12000, scoped, tag = 'internal scratch']
  #allocation2 [shape = 'f32[18,25,8]{2,1,0:T(8,128)}', space=vmem, size = 0x48000, scoped, tag = 'scratch operand']
  %s0 = inlined_call_operand.hbm [shape: f32[2,16,16,16], index: 0, kind: input, shape index: {}]
  %s1 = inlined_call_operand.vmem [shape: bf16[16,8], index: 1, kind: input, shape index: {}]
  %s2 = inlined_call_operand.vmem [shape: f32[1,8], index: 2, kind: input, shape index: {}]
  %s3 = inlined_call_operand.vmem [shape: f32[9,8], index: 3, kind: input, shape index: {}]
  %s4 = inlined_call_operand.vmem [shape: f32[1,8], index: 4, kind: input, shape index: {}]
  %s5 = inlined_call_operand.vmem [shape: bf16[8,16], index: 5, kind: input, shape index: {}]
  %s6 = inlined_call_operand.vmem [shape: f32[1,16], index: 6, kind: input, shape index: {}]
  %s7 = inlined_call_operand.hbm [shape: f32[2,16,16,16], index: 7, kind: output, shape index: {}]
  %s8 = sld [smem:[#allocation0]]
  $region65: #{tpu_custom_call.1} parent=0
    _
  %s10 = ssub.s32 1, %s8
  %s11 = scalar_select 0, %s10, %s8
  $region1: #{tpu_custom_call.1} parent=0
    #allocation3 [shape = 'u8[262144]{0}', space=vmem, size = 0x40000, scoped, tag = 'input window, operand 0']
    #allocation4 [shape = 's32[2]{0}', space=sflag, size = 0x8, scoped, tag = 'scoped memory for tpu_custom_call.1']
    #allocation5 [shape = 's32[2]{0}', space=sflag, size = 0x8, scoped, tag = 'scoped memory for tpu_custom_call.1']
    #allocation6 [shape = 'u8[262144]{0}', space=vmem, size = 0x40000, scoped, tag = 'output window, operand 0']
    %12 = vsyncpa [#allocation4], 0
    %s13 = scalar_lea.sflag [#allocation4], 1
    %14 = vsyncpa %s13, 0
    %15 = vsyncpa [#allocation5], 0
    %s16 = scalar_lea.sflag [#allocation5], 1
    %17 = vsyncpa %s16, 0
    loop: start=0, step=1, limit=4
    $region2: #{tpu_custom_call.1} parent=1 // loop_pre_header
      _
    $region3: #{tpu_custom_call.1} parent=1 // loop_header
      %s19 = sphi 0, %s23
      %p20 = scmp.ge.s32.totalorder %s19, 4
      %s29 = sphi 0, %s31
      %s32 = sphi 0, %s29
      %s33 = sphi 0, %s32
      %s49 = sphi 0, %s33
      %s53 = sphi 0, %s53
      %s55 = sphi 0, %s53
      %s56 = sphi 0, %s55
      %s70 = sphi 0, %s56
      %s74 = sphi 0, %s74
      %s76 = sphi 0, %s74
      %s77 = sphi 0, %s76
      %s91 = sphi 0, %s77
      %s95 = sphi 0, %s95
      %s97 = sphi 0, %s95
      %s98 = sphi 0, %s97
      %s112 = sphi 0, %s98
      %s116 = sphi 0, %s116
      %s118 = sphi 0, %s116
      %s119 = sphi 0, %s118
      %s133 = sphi 0, %s119
      %s137 = sphi 0, %s137
      %s139 = sphi 0, %s137
      %s140 = sphi 0, %s139
      %s154 = sphi 0, %s140
      %s158 = sphi 0, %s158
      %s160 = sphi 0, %s158
      %s161 = sphi 0, %s160
      %s175 = sphi 0, %s161
      %s181 = sphi 0, %s183
      %s184 = sphi 0, %s181
      %s185 = sphi 0, %s184
      %s201 = sphi 0, %s185
    $region4: #{tpu_custom_call.1} parent=1 // loop_header_branch
      %22 = sbr.rel (%p20) target = $region8
    $region5: #{tpu_custom_call.1} parent=1 // loop_body
      %s24 = ssub.s32 %s19, 1
      %s25 = ssub.s32 %s19, 2
      %s26 = sadd.s32 %s19, 1
      %s27 = ssub.s32 %s19, %s26
      %p28 = scmp.eq.s32.totalorder %s27, 0
      %s30 = sadd.s32 %s29, 1
      %s31 = scalar_select %p28, %s29, %s30
      %p34 = pneg %p28
      %p35 = scmp.eq.s32.totalorder %s19, 1
      %p36 = por %p34, %p35
      %p37 = scmp.ne.s32.totalorder %s29, %s32
      %p38 = scmp.eq.s32.totalorder %s19, 0
      %p39 = por %p37, %p38
      %p40 = scmp.ne.s32.totalorder %s29, %s32
      %p41 = scmp.eq.s32.totalorder %s24, 1
      %p42 = por %p40, %p41
      %p43 = scmp.ne.s32.totalorder %s32, %s33
      %p44 = scmp.eq.s32.totalorder %s24, 0
      %p45 = por %p43, %p44
      %p46 = scmp.ne.s32.totalorder %s32, %s33
      %p47 = scmp.eq.s32.totalorder %s25, 1
      %p48 = por %p46, %p47
      %p50 = scmp.ne.s32.totalorder %s33, %s49
      %p51 = scmp.eq.s32.totalorder %s25, 0
      %p52 = por %p50, %p51
      %s54 = sadd.s32 %s53, 1
      %p57 = scmp.eq.s32.totalorder %s19, 1
      %p58 = scmp.ne.s32.totalorder %s53, %s55
      %p59 = scmp.eq.s32.totalorder %s19, 0
      %p60 = por %p58, %p59
      %p61 = scmp.ne.s32.totalorder %s53, %s55
      %p62 = scmp.eq.s32.totalorder %s24, 1
      %p63 = por %p61, %p62
      %p64 = scmp.ne.s32.totalorder %s55, %s56
      %p65 = scmp.eq.s32.totalorder %s24, 0
      %p66 = por %p64, %p65
      %p67 = scmp.ne.s32.totalorder %s55, %s56
      %p68 = scmp.eq.s32.totalorder %s25, 1
      %p69 = por %p67, %p68
      %p71 = scmp.ne.s32.totalorder %s56, %s70
      %p72 = scmp.eq.s32.totalorder %s25, 0
      %p73 = por %p71, %p72
      %s75 = sadd.s32 %s74, 1
      %p78 = scmp.eq.s32.totalorder %s19, 1
      %p79 = scmp.ne.s32.totalorder %s74, %s76
      %p80 = scmp.eq.s32.totalorder %s19, 0
      %p81 = por %p79, %p80
      %p82 = scmp.ne.s32.totalorder %s74, %s76
      %p83 = scmp.eq.s32.totalorder %s24, 1
      %p84 = por %p82, %p83
      %p85 = scmp.ne.s32.totalorder %s76, %s77
      %p86 = scmp.eq.s32.totalorder %s24, 0
      %p87 = por %p85, %p86
      %p88 = scmp.ne.s32.totalorder %s76, %s77
      %p89 = scmp.eq.s32.totalorder %s25, 1
      %p90 = por %p88, %p89
      %p92 = scmp.ne.s32.totalorder %s77, %s91
      %p93 = scmp.eq.s32.totalorder %s25, 0
      %p94 = por %p92, %p93
      %s96 = sadd.s32 %s95, 1
      %p99 = scmp.eq.s32.totalorder %s19, 1
      %p100 = scmp.ne.s32.totalorder %s95, %s97
      %p101 = scmp.eq.s32.totalorder %s19, 0
      %p102 = por %p100, %p101
      %p103 = scmp.ne.s32.totalorder %s95, %s97
      %p104 = scmp.eq.s32.totalorder %s24, 1
      %p105 = por %p103, %p104
      %p106 = scmp.ne.s32.totalorder %s97, %s98
      %p107 = scmp.eq.s32.totalorder %s24, 0
      %p108 = por %p106, %p107
      %p109 = scmp.ne.s32.totalorder %s97, %s98
      %p110 = scmp.eq.s32.totalorder %s25, 1
      %p111 = por %p109, %p110
      %p113 = scmp.ne.s32.totalorder %s98, %s112
      %p114 = scmp.eq.s32.totalorder %s25, 0
      %p115 = por %p113, %p114
      %s117 = sadd.s32 %s116, 1
      %p120 = scmp.eq.s32.totalorder %s19, 1
      %p121 = scmp.ne.s32.totalorder %s116, %s118
      %p122 = scmp.eq.s32.totalorder %s19, 0
      %p123 = por %p121, %p122
      %p124 = scmp.ne.s32.totalorder %s116, %s118
      %p125 = scmp.eq.s32.totalorder %s24, 1
      %p126 = por %p124, %p125
      %p127 = scmp.ne.s32.totalorder %s118, %s119
      %p128 = scmp.eq.s32.totalorder %s24, 0
      %p129 = por %p127, %p128
      %p130 = scmp.ne.s32.totalorder %s118, %s119
      %p131 = scmp.eq.s32.totalorder %s25, 1
      %p132 = por %p130, %p131
      %p134 = scmp.ne.s32.totalorder %s119, %s133
      %p135 = scmp.eq.s32.totalorder %s25, 0
      %p136 = por %p134, %p135
      %s138 = sadd.s32 %s137, 1
      %p141 = scmp.eq.s32.totalorder %s19, 1
      %p142 = scmp.ne.s32.totalorder %s137, %s139
      %p143 = scmp.eq.s32.totalorder %s19, 0
      %p144 = por %p142, %p143
      %p145 = scmp.ne.s32.totalorder %s137, %s139
      %p146 = scmp.eq.s32.totalorder %s24, 1
      %p147 = por %p145, %p146
      %p148 = scmp.ne.s32.totalorder %s139, %s140
      %p149 = scmp.eq.s32.totalorder %s24, 0
      %p150 = por %p148, %p149
      %p151 = scmp.ne.s32.totalorder %s139, %s140
      %p152 = scmp.eq.s32.totalorder %s25, 1
      %p153 = por %p151, %p152
      %p155 = scmp.ne.s32.totalorder %s140, %s154
      %p156 = scmp.eq.s32.totalorder %s25, 0
      %p157 = por %p155, %p156
      %s159 = sadd.s32 %s158, 1
      %p162 = scmp.eq.s32.totalorder %s19, 1
      %p163 = scmp.ne.s32.totalorder %s158, %s160
      %p164 = scmp.eq.s32.totalorder %s19, 0
      %p165 = por %p163, %p164
      %p166 = scmp.ne.s32.totalorder %s158, %s160
      %p167 = scmp.eq.s32.totalorder %s24, 1
      %p168 = por %p166, %p167
      %p169 = scmp.ne.s32.totalorder %s160, %s161
      %p170 = scmp.eq.s32.totalorder %s24, 0
      %p171 = por %p169, %p170
      %p172 = scmp.ne.s32.totalorder %s160, %s161
      %p173 = scmp.eq.s32.totalorder %s25, 1
      %p174 = por %p172, %p173
      %p176 = scmp.ne.s32.totalorder %s161, %s175
      %p177 = scmp.eq.s32.totalorder %s25, 0
      %p178 = por %p176, %p177
      %s179 = ssub.s32 %s19, %s26
      %p180 = scmp.eq.s32.totalorder %s179, 0
      %s182 = sadd.s32 %s181, 1
      %s183 = scalar_select %p180, %s181, %s182
      %p186 = pneg %p180
      %p187 = scmp.eq.s32.totalorder %s19, 1
      %p188 = por %p186, %p187
      %p189 = scmp.ne.s32.totalorder %s181, %s184
      %p190 = scmp.eq.s32.totalorder %s19, 0
      %p191 = por %p189, %p190
      %p192 = scmp.ne.s32.totalorder %s181, %s184
      %p193 = scmp.eq.s32.totalorder %s24, 1
      %p194 = por %p192, %p193
      %p195 = scmp.ne.s32.totalorder %s184, %s185
      %p196 = scmp.eq.s32.totalorder %s24, 0
      %p197 = por %p195, %p196
      %p198 = scmp.ne.s32.totalorder %s184, %s185
      %p199 = scmp.eq.s32.totalorder %s25, 1
      %p200 = por %p198, %p199
      %p202 = scmp.ne.s32.totalorder %s185, %s201
      %p203 = scmp.eq.s32.totalorder %s25, 0
      %p204 = por %p202, %p203
      %p205 = scmp.le.s32.totalorder 1, %s19
      %p206 = scmp.lt.s32.totalorder %s19, 3
      %p207 = pnand %p205, %p206
      %p208 = pneg %p207
      // Predicated region
      $region9: #{tpu_custom_call.1} parent=5 // pred_check
        _
      $region10: #{tpu_custom_call.1} parent=5 // pred_check_branch
        %210 = sbr.rel (%p207) target = $region12
      $region11: #{tpu_custom_call.1} parent=5 // pred_region
        %s211 = ssub.s32 %s19, 1
        // Predicated region
        $region13: #{tpu_custom_call.1} parent=11 // pred_check
          %p212 = pneg %p66
        $region14: #{tpu_custom_call.1} parent=11 // pred_check_branch
          %214 = sbr.rel (%p212) target = $region16
        $region15: #{tpu_custom_call.1} parent=11 // pred_region
          _
        $region16: #{tpu_custom_call.1} parent=11 // pred_fallthru
          _
        // Predicated region
        $region17: #{tpu_custom_call.1} parent=11 // pred_check
          %p215 = pneg %p87
        $region18: #{tpu_custom_call.1} parent=11 // pred_check_branch
          %217 = sbr.rel (%p215) target = $region20
        $region19: #{tpu_custom_call.1} parent=11 // pred_region
          _
        $region20: #{tpu_custom_call.1} parent=11 // pred_fallthru
          _
        // Predicated region
        $region21: #{tpu_custom_call.1} parent=11 // pred_check
          %p218 = pneg %p108
        $region22: #{tpu_custom_call.1} parent=11 // pred_check_branch
          %220 = sbr.rel (%p218) target = $region24
        $region23: #{tpu_custom_call.1} parent=11 // pred_region
          _
        $region24: #{tpu_custom_call.1} parent=11 // pred_fallthru
          _
        // Predicated region
        $region25: #{tpu_custom_call.1} parent=11 // pred_check
          %p221 = pneg %p129
        $region26: #{tpu_custom_call.1} parent=11 // pred_check_branch
          %223 = sbr.rel (%p221) target = $region28
        $region27: #{tpu_custom_call.1} parent=11 // pred_region
          _
        $region28: #{tpu_custom_call.1} parent=11 // pred_fallthru
          _
        // Predicated region
        $region29: #{tpu_custom_call.1} parent=11 // pred_check
          %p224 = pneg %p150
        $region30: #{tpu_custom_call.1} parent=11 // pred_check_branch
          %226 = sbr.rel (%p224) target = $region32
        $region31: #{tpu_custom_call.1} parent=11 // pred_region
          _
        $region32: #{tpu_custom_call.1} parent=11 // pred_fallthru
          _
        // Predicated region
        $region33: #{tpu_custom_call.1} parent=11 // pred_check
          %p227 = pneg %p171
        $region34: #{tpu_custom_call.1} parent=11 // pred_check_branch
          %229 = sbr.rel (%p227) target = $region36
        $region35: #{tpu_custom_call.1} parent=11 // pred_region
          _
        $region36: #{tpu_custom_call.1} parent=11 // pred_fallthru
          _
      $region12: #{tpu_custom_call.1} parent=5 // pred_fallthru
        _
      %p230 = scmp.lt.s32.totalorder %s19, 2
      // Predicated region
      $region37: #{tpu_custom_call.1} parent=5 // pred_check
        %p231 = pneg %p230
      $region38: #{tpu_custom_call.1} parent=5 // pred_check_branch
        %233 = sbr.rel (%p231) target = $region40
      $region39: #{tpu_custom_call.1} parent=5 // pred_region
        // Predicated region
        $region41: #{tpu_custom_call.1} parent=39 // pred_check
          %p234 = pneg %p39
        $region42: #{tpu_custom_call.1} parent=39 // pred_check_branch
          %236 = sbr.rel (%p234) target = $region44
        $region43: #{tpu_custom_call.1} parent=39 // pred_region
          %s237 = sand.u32 %s29, 1
          %s238 = scalar_lea.sflag [#allocation4], %s237
          %s239 = sand.u32 %s29, 1
          %s240 = smul.addr %s239, 256
          %s241 = scalar_lea.vmem [#allocation3], %s240
          %s243 = ssub.s32 4096, 4096
          %244 = vsyncadd %s238, %s243
          %s245 = smul.addr %s19, 32
          %s246 = smul.addr %s245, 128
          %s247 = scalar_lea.hbm %s0, %s246
          %s248 = sshll.u32 %s241, 4
          %s249 = int_to_ptr.vmem [resolvable:$true] %s248
          %254 = dma.hbm_to_vmem [thread:$0]  %s247, 4096, %s249, %s238, 128, 128, 8
        $region44: #{tpu_custom_call.1} parent=39 // pred_fallthru
          _
      $region40: #{tpu_custom_call.1} parent=5 // pred_fallthru
        _
      %p255 = scmp.le.s32.totalorder 1, %s19
      %p256 = scmp.lt.s32.totalorder %s19, 3
      %p257 = pnand %p255, %p256
      %p258 = pneg %p257
      // Predicated region
      $region45: #{tpu_custom_call.1} parent=5 // pred_check
        _
      $region46: #{tpu_custom_call.1} parent=5 // pred_check_branch
        %260 = sbr.rel (%p257) target = $region48
      $region47: #{tpu_custom_call.1} parent=5 // pred_region
        %s261 = ssub.s32 %s19, 1
        %s262 = sand.u32 %s32, 1
        %s263 = scalar_lea.sflag [#allocation4], %s262
        %s264 = sand.u32 %s32, 1
        %s265 = smul.addr %s264, 256
        %s266 = scalar_lea.vmem [#allocation3], %s265
        // Predicated region
        $region49: #{tpu_custom_call.1} parent=47 // pred_check
          %p267 = pneg %p45
        $region50: #{tpu_custom_call.1} parent=47 // pred_check_branch
          %269 = sbr.rel (%p267) target = $region52
        $region51: #{tpu_custom_call.1} parent=47 // pred_region
          %270 = dma.done %s263, 4096
        $region52: #{tpu_custom_call.1} parent=47 // pred_fallthru
          _
        %s271 = sand.u32 %s32, 1
        %s272 = scalar_lea.sflag [#allocation4], %s271
        %s273 = sand.u32 %s32, 1
        %s274 = smul.addr %s273, 256
        %s275 = scalar_lea.vmem [#allocation3], %s274
        %p276 = pneg %p45
        %p277 = pneg %p42
        %p278 = pneg %p66
        %p279 = pneg %p63
        %p280 = pneg %p87
        %p281 = pneg %p84
        %p282 = pneg %p108
        %p283 = pneg %p105
        %p284 = pneg %p129
        %p285 = pneg %p126
        %p286 = pneg %p150
        %p287 = pneg %p147
        %p288 = pneg %p171
        %p289 = pneg %p168
        %p290 = pneg %p197
        %p291 = pneg %p194
        %s292 = sand.u32 %s184, 1
        %s293 = scalar_lea.sflag [#allocation5], %s292
        %s294 = sand.u32 %s184, 1
        %s295 = smul.addr %s294, 256
        %s296 = scalar_lea.vmem [#allocation6], %s295
        %v298 = vld [vmem:[%s266] sm:$0xff]
        %v299 = vld [vmem:[%s266 + $0x8] sm:$0xff]
        %v300 = vld [vmem:[%s266 + $0x10] sm:$0xff]
        %v301 = vld [vmem:[%s266 + $0x18] sm:$0xff]
        %v302 = vld [vmem:[%s266 + $0x20] sm:$0xff]
        %v303 = vld [vmem:[%s266 + $0x28] sm:$0xff]
        %v304 = vld [vmem:[%s266 + $0x30] sm:$0xff]
        %v305 = vld [vmem:[%s266 + $0x38] sm:$0xff]
        %v306 = vld [vmem:[%s266 + $0x40] sm:$0xff]
        %v307 = vld [vmem:[%s266 + $0x48] sm:$0xff]
        %v308 = vld [vmem:[%s266 + $0x50] sm:$0xff]
        %v309 = vld [vmem:[%s266 + $0x58] sm:$0xff]
        %v310 = vld [vmem:[%s266 + $0x60] sm:$0xff]
        %v311 = vld [vmem:[%s266 + $0x68] sm:$0xff]
        %v312 = vld [vmem:[%s266 + $0x70] sm:$0xff]
        %v313 = vld [vmem:[%s266 + $0x78] sm:$0xff]
        %v314 = vld [vmem:[%s266 + $0x80] sm:$0xff]
        %v315 = vld [vmem:[%s266 + $0x88] sm:$0xff]
        %v316 = vld [vmem:[%s266 + $0x90] sm:$0xff]
        %v317 = vld [vmem:[%s266 + $0x98] sm:$0xff]
        %v318 = vld [vmem:[%s266 + $0xa0] sm:$0xff]
        %v319 = vld [vmem:[%s266 + $0xa8] sm:$0xff]
        %v320 = vld [vmem:[%s266 + $0xb0] sm:$0xff]
        %v321 = vld [vmem:[%s266 + $0xb8] sm:$0xff]
        %v322 = vld [vmem:[%s266 + $0xc0] sm:$0xff]
        %v323 = vld [vmem:[%s266 + $0xc8] sm:$0xff]
        %v324 = vld [vmem:[%s266 + $0xd0] sm:$0xff]
        %v325 = vld [vmem:[%s266 + $0xd8] sm:$0xff]
        %v326 = vld [vmem:[%s266 + $0xe0] sm:$0xff]
        %v327 = vld [vmem:[%s266 + $0xe8] sm:$0xff]
        %v328 = vld [vmem:[%s266 + $0xf0] sm:$0xff]
        %v329 = vld [vmem:[%s266 + $0xf8] sm:$0xff]
        %v330 = vpack.c.bf16 %v299, %v298
        %v331 = vpack.c.bf16 %v301, %v300
        %v332 = vpack.c.bf16 %v303, %v302
        %v333 = vpack.c.bf16 %v305, %v304
        %v334 = vpack.c.bf16 %v307, %v306
        %v335 = vpack.c.bf16 %v309, %v308
        %v336 = vpack.c.bf16 %v311, %v310
        %v337 = vpack.c.bf16 %v313, %v312
        %v338 = vpack.c.bf16 %v315, %v314
        %v339 = vpack.c.bf16 %v317, %v316
        %v340 = vpack.c.bf16 %v319, %v318
        %v341 = vpack.c.bf16 %v321, %v320
        %v342 = vpack.c.bf16 %v323, %v322
        %v343 = vpack.c.bf16 %v325, %v324
        %v344 = vpack.c.bf16 %v327, %v326
        %v345 = vpack.c.bf16 %v329, %v328
        %v346 = vld [vmem:[%s1] sm:$0xf]
        %v347 = vld [vmem:[%s1 + $0x4] sm:$0xf]
        %v350 = vunpack.c.l.b16 %v346
        %v351 = vunpack.c.l.b16 %v347
        %v352 = vpack.c.b16 %v351, %v350
        %vm354 = vcmask 130048
        %v356 = vsel %vm354, %v330, 0
        %v359 = vsel %vm354, %v331, 0
        %v362 = vsel %vm354, %v332, 0
        %v365 = vsel %vm354, %v333, 0
        %v368 = vsel %vm354, %v334, 0
        %v371 = vsel %vm354, %v335, 0
        %v374 = vsel %vm354, %v336, 0
        %v377 = vsel %vm354, %v337, 0
        %v380 = vsel %vm354, %v338, 0
        %v383 = vsel %vm354, %v339, 0
        %v386 = vsel %vm354, %v340, 0
        %v389 = vsel %vm354, %v341, 0
        %v392 = vsel %vm354, %v342, 0
        %v395 = vsel %vm354, %v343, 0
        %v398 = vsel %vm354, %v344, 0
        %v401 = vsel %vm354, %v345, 0
        %403 = vmatprep.subr.bf16.mxu0 0
        %404 = vmatpush1.bf16.msra.mxu0 0
        %405 = vmatprep.subr.bf16.mxu0 0
        %406 = vmatpush1.bf16.msra.mxu0 0
        %407 = vmatprep.subr.bf16.mxu0 0
        %408 = vmatpush1.bf16.msra.mxu0 0
        %409 = vmatprep.subr.bf16.mxu0 0
        %410 = vmatpush1.bf16.msra.mxu0 0
        %411 = vmatprep.subr.bf16.mxu0 0
        %412 = vmatpush1.bf16.msra.mxu0 0
        %413 = vmatprep.subr.bf16.mxu0 0
        %414 = vmatpush1.bf16.msra.mxu0 0
        %415 = vmatprep.subr.bf16.mxu0 0
        %416 = vmatpush1.bf16.msra.mxu0 0
        %417 = vmatprep.subr.bf16.mxu0 0
        %418 = vmatpush1.bf16.msra.mxu0 %v352
        %419 = vmatprep.subr.bf16.mxu0 0
        %420 = vmatpush2.bf16.msra.mxu0 0
        %421 = vmatprep.subr.bf16.mxu0 0
        %422 = vmatpush2.bf16.msra.mxu0 0
        %423 = vmatprep.subr.bf16.mxu0 0
        %424 = vmatpush2.bf16.msra.mxu0 0
        %425 = vmatprep.subr.bf16.mxu0 0
        %426 = vmatpush2.bf16.msra.mxu0 0
        %427 = vmatprep.subr.bf16.mxu0 0
        %428 = vmatpush2.bf16.msra.mxu0 0
        %429 = vmatprep.subr.bf16.mxu0 0
        %430 = vmatpush2.bf16.msra.mxu0 0
        %431 = vmatprep.subr.bf16.mxu0 0
        %432 = vmatpush2.bf16.msra.mxu0 0
        %433 = vmatprep.subr.bf16.mxu0 0
        %434 = vmatpush2.bf16.msra.mxu0 0
        %435 = vmatprep.mubr.bf16.mxu0 0
        %436 = vmatmul.mubr.bf16.gmra.mxu0 %v356
        %v437 = vpop.f32.mrf.mxu0
        %v438 = vadd.f32 0.0, %v437
        %v439 = vpop.f32.mrf.mxu0
        %v440 = vpop.f32.mrf.mxu0
        %v441 = vadd.f32 0.0, %v440
        %v442 = vpop.f32.mrf.mxu0
        %443 = vmatprep.mubr.bf16.mxu0 0
        %444 = vmatmul.mubr.bf16.gmra.mxu0 %v359
        %v445 = vpop.f32.mrf.mxu0
        %v446 = vadd.f32 0.0, %v445
        %v447 = vpop.f32.mrf.mxu0
        %v448 = vpop.f32.mrf.mxu0
        %v449 = vadd.f32 0.0, %v448
        %v450 = vpop.f32.mrf.mxu0
        %451 = vmatprep.mubr.bf16.mxu0 0
        %452 = vmatmul.mubr.bf16.gmra.mxu0 %v362
        %v453 = vpop.f32.mrf.mxu0
        %v454 = vadd.f32 0.0, %v453
        %v455 = vpop.f32.mrf.mxu0
        %v456 = vpop.f32.mrf.mxu0
        %v457 = vadd.f32 0.0, %v456
        %v458 = vpop.f32.mrf.mxu0
        %459 = vmatprep.mubr.bf16.mxu0 0
        %460 = vmatmul.mubr.bf16.gmra.mxu0 %v365
        %v461 = vpop.f32.mrf.mxu0
        %v462 = vadd.f32 0.0, %v461
        %v463 = vpop.f32.mrf.mxu0
        %v464 = vpop.f32.mrf.mxu0
        %v465 = vadd.f32 0.0, %v464
        %v466 = vpop.f32.mrf.mxu0
        %467 = vmatprep.mubr.bf16.mxu0 0
        %468 = vmatmul.mubr.bf16.gmra.mxu0 %v368
        %v469 = vpop.f32.mrf.mxu0
        %v470 = vadd.f32 0.0, %v469
        %v471 = vpop.f32.mrf.mxu0
        %v472 = vpop.f32.mrf.mxu0
        %v473 = vadd.f32 0.0, %v472
        %v474 = vpop.f32.mrf.mxu0
        %475 = vmatprep.mubr.bf16.mxu0 0
        %476 = vmatmul.mubr.bf16.gmra.mxu0 %v371
        %v477 = vpop.f32.mrf.mxu0
        %v478 = vadd.f32 0.0, %v477
        %v479 = vpop.f32.mrf.mxu0
        %v480 = vpop.f32.mrf.mxu0
        %v481 = vadd.f32 0.0, %v480
        %v482 = vpop.f32.mrf.mxu0
        %483 = vmatprep.mubr.bf16.mxu0 0
        %484 = vmatmul.mubr.bf16.gmra.mxu0 %v374
        %v485 = vpop.f32.mrf.mxu0
        %v486 = vadd.f32 0.0, %v485
        %v487 = vpop.f32.mrf.mxu0
        %v488 = vpop.f32.mrf.mxu0
        %v489 = vadd.f32 0.0, %v488
        %v490 = vpop.f32.mrf.mxu0
        %491 = vmatprep.mubr.bf16.mxu0 0
        %492 = vmatmul.mubr.bf16.gmra.mxu0 %v377
        %v493 = vpop.f32.mrf.mxu0
        %v494 = vadd.f32 0.0, %v493
        %v495 = vpop.f32.mrf.mxu0
        %v496 = vpop.f32.mrf.mxu0
        %v497 = vadd.f32 0.0, %v496
        %v498 = vpop.f32.mrf.mxu0
        %499 = vmatprep.mubr.bf16.mxu0 0
        %500 = vmatmul.mubr.bf16.gmra.mxu0 %v380
        %v501 = vpop.f32.mrf.mxu0
        %v502 = vadd.f32 0.0, %v501
        %v503 = vpop.f32.mrf.mxu0
        %v504 = vpop.f32.mrf.mxu0
        %v505 = vadd.f32 0.0, %v504
        %v506 = vpop.f32.mrf.mxu0
        %507 = vmatprep.mubr.bf16.mxu0 0
        %508 = vmatmul.mubr.bf16.gmra.mxu0 %v383
        %v509 = vpop.f32.mrf.mxu0
        %v510 = vadd.f32 0.0, %v509
        %v511 = vpop.f32.mrf.mxu0
        %v512 = vpop.f32.mrf.mxu0
        %v513 = vadd.f32 0.0, %v512
        %v514 = vpop.f32.mrf.mxu0
        %515 = vmatprep.mubr.bf16.mxu0 0
        %516 = vmatmul.mubr.bf16.gmra.mxu0 %v386
        %v517 = vpop.f32.mrf.mxu0
        %v518 = vadd.f32 0.0, %v517
        %v519 = vpop.f32.mrf.mxu0
        %v520 = vpop.f32.mrf.mxu0
        %v521 = vadd.f32 0.0, %v520
        %v522 = vpop.f32.mrf.mxu0
        %523 = vmatprep.mubr.bf16.mxu0 0
        %524 = vmatmul.mubr.bf16.gmra.mxu0 %v389
        %v525 = vpop.f32.mrf.mxu0
        %v526 = vadd.f32 0.0, %v525
        %v527 = vpop.f32.mrf.mxu0
        %v528 = vpop.f32.mrf.mxu0
        %v529 = vadd.f32 0.0, %v528
        %v530 = vpop.f32.mrf.mxu0
        %531 = vmatprep.mubr.bf16.mxu0 0
        %532 = vmatmul.mubr.bf16.gmra.mxu0 %v392
        %v533 = vpop.f32.mrf.mxu0
        %v534 = vadd.f32 0.0, %v533
        %v535 = vpop.f32.mrf.mxu0
        %v536 = vpop.f32.mrf.mxu0
        %v537 = vadd.f32 0.0, %v536
        %v538 = vpop.f32.mrf.mxu0
        %539 = vmatprep.mubr.bf16.mxu0 0
        %540 = vmatmul.mubr.bf16.gmra.mxu0 %v395
        %v541 = vpop.f32.mrf.mxu0
        %v542 = vadd.f32 0.0, %v541
        %v543 = vpop.f32.mrf.mxu0
        %v544 = vpop.f32.mrf.mxu0
        %v545 = vadd.f32 0.0, %v544
        %v546 = vpop.f32.mrf.mxu0
        %547 = vmatprep.mubr.bf16.mxu0 0
        %548 = vmatmul.mubr.bf16.gmra.mxu0 %v398
        %v549 = vpop.f32.mrf.mxu0
        %v550 = vadd.f32 0.0, %v549
        %v551 = vpop.f32.mrf.mxu0
        %v552 = vpop.f32.mrf.mxu0
        %v553 = vadd.f32 0.0, %v552
        %v554 = vpop.f32.mrf.mxu0
        %555 = vmatprep.mubr.bf16.mxu0 0
        %556 = vmatmul.mubr.bf16.gmra.mxu0 %v401
        %v557 = vpop.f32.mrf.mxu0
        %v558 = vadd.f32 0.0, %v557
        %v559 = vpop.f32.mrf.mxu0
        %v560 = vpop.f32.mrf.mxu0
        %v561 = vadd.f32 0.0, %v560
        %v562 = vpop.f32.mrf.mxu0
        %563 = vdwg.mxu0
        %v564 = vld [vmem:[%s2] sm:$0x1]
        %v566 = vlaneseq
        %v567 = vshrl.u32 %v566, 7
        %v568 = vsub.s32 0, %v567
        %v569 = vrot.slane %v564, %v568
        %v571 = vadd.f32 %v438, %v569
        %v572 = vadd.f32 %v441, %v569
        %v573 = vadd.f32 %v446, %v569
        %v574 = vadd.f32 %v449, %v569
        %v575 = vadd.f32 %v454, %v569
        %v576 = vadd.f32 %v457, %v569
        %v577 = vadd.f32 %v462, %v569
        %v578 = vadd.f32 %v465, %v569
        %v579 = vadd.f32 %v470, %v569
        %v580 = vadd.f32 %v473, %v569
        %v581 = vadd.f32 %v478, %v569
        %v582 = vadd.f32 %v481, %v569
        %v583 = vadd.f32 %v486, %v569
        %v584 = vadd.f32 %v489, %v569
        %v585 = vadd.f32 %v494, %v569
        %v586 = vadd.f32 %v497, %v569
        %v587 = vadd.f32 %v502, %v569
        %v588 = vadd.f32 %v505, %v569
        %v589 = vadd.f32 %v510, %v569
        %v590 = vadd.f32 %v513, %v569
        %v591 = vadd.f32 %v518, %v569
        %v592 = vadd.f32 %v521, %v569
        %v593 = vadd.f32 %v526, %v569
        %v594 = vadd.f32 %v529, %v569
        %v595 = vadd.f32 %v534, %v569
        %v596 = vadd.f32 %v537, %v569
        %v597 = vadd.f32 %v542, %v569
        %v598 = vadd.f32 %v545, %v569
        %v599 = vadd.f32 %v550, %v569
        %v600 = vadd.f32 %v553, %v569
        %v601 = vadd.f32 %v558, %v569
        %v602 = vadd.f32 %v561, %v569
        %v603 = vmul.f32 %v571, 0.5
        %v604 = vmul.f32 %v572, 0.5
        %v605 = vmul.f32 %v573, 0.5
        %v606 = vmul.f32 %v574, 0.5
        %v607 = vmul.f32 %v575, 0.5
        %v608 = vmul.f32 %v576, 0.5
        %v609 = vmul.f32 %v577, 0.5
        %v610 = vmul.f32 %v578, 0.5
        %v611 = vmul.f32 %v579, 0.5
        %v612 = vmul.f32 %v580, 0.5
        %v613 = vmul.f32 %v581, 0.5
        %v614 = vmul.f32 %v582, 0.5
        %v615 = vmul.f32 %v583, 0.5
        %v616 = vmul.f32 %v584, 0.5
        %v617 = vmul.f32 %v585, 0.5
        %v618 = vmul.f32 %v586, 0.5
        %v619 = vmul.f32 %v587, 0.5
        %v620 = vmul.f32 %v588, 0.5
        %v621 = vmul.f32 %v589, 0.5
        %v622 = vmul.f32 %v590, 0.5
        %v623 = vmul.f32 %v591, 0.5
        %v624 = vmul.f32 %v592, 0.5
        %v625 = vmul.f32 %v593, 0.5
        %v626 = vmul.f32 %v594, 0.5
        %v627 = vmul.f32 %v595, 0.5
        %v628 = vmul.f32 %v596, 0.5
        %v629 = vmul.f32 %v597, 0.5
        %v630 = vmul.f32 %v598, 0.5
        %v631 = vmul.f32 %v599, 0.5
        %v632 = vmul.f32 %v600, 0.5
        %v633 = vmul.f32 %v601, 0.5
        %v634 = vmul.f32 %v602, 0.5
        %v635 = vtanh.pop %v603
        %v636 = vtanh.pop %v604
        %v637 = vtanh.pop %v605
        %v638 = vtanh.pop %v606
        %v639 = vtanh.pop %v607
        %v640 = vtanh.pop %v608
        %v641 = vtanh.pop %v609
        %v642 = vtanh.pop %v610
        %v643 = vtanh.pop %v611
        %v644 = vtanh.pop %v612
        %v645 = vtanh.pop %v613
        %v646 = vtanh.pop %v614
        %v647 = vtanh.pop %v615
        %v648 = vtanh.pop %v616
        %v649 = vtanh.pop %v617
        %v650 = vtanh.pop %v618
        %v651 = vtanh.pop %v619
        %v652 = vtanh.pop %v620
        %v653 = vtanh.pop %v621
        %v654 = vtanh.pop %v622
        %v655 = vtanh.pop %v623
        %v656 = vtanh.pop %v624
        %v657 = vtanh.pop %v625
        %v658 = vtanh.pop %v626
        %v659 = vtanh.pop %v627
        %v660 = vtanh.pop %v628
        %v661 = vtanh.pop %v629
        %v662 = vtanh.pop %v630
        %v663 = vtanh.pop %v631
        %v664 = vtanh.pop %v632
        %v665 = vtanh.pop %v633
        %v666 = vtanh.pop %v634
        %v667 = vadd.f32 %v635, 1.0
        %v668 = vadd.f32 %v636, 1.0
        %v669 = vadd.f32 %v637, 1.0
        %v670 = vadd.f32 %v638, 1.0
        %v671 = vadd.f32 %v639, 1.0
        %v672 = vadd.f32 %v640, 1.0
        %v673 = vadd.f32 %v641, 1.0
        %v674 = vadd.f32 %v642, 1.0
        %v675 = vadd.f32 %v643, 1.0
        %v676 = vadd.f32 %v644, 1.0
        %v677 = vadd.f32 %v645, 1.0
        %v678 = vadd.f32 %v646, 1.0
        %v679 = vadd.f32 %v647, 1.0
        %v680 = vadd.f32 %v648, 1.0
        %v681 = vadd.f32 %v649, 1.0
        %v682 = vadd.f32 %v650, 1.0
        %v683 = vadd.f32 %v651, 1.0
        %v684 = vadd.f32 %v652, 1.0
        %v685 = vadd.f32 %v653, 1.0
        %v686 = vadd.f32 %v654, 1.0
        %v687 = vadd.f32 %v655, 1.0
        %v688 = vadd.f32 %v656, 1.0
        %v689 = vadd.f32 %v657, 1.0
        %v690 = vadd.f32 %v658, 1.0
        %v691 = vadd.f32 %v659, 1.0
        %v692 = vadd.f32 %v660, 1.0
        %v693 = vadd.f32 %v661, 1.0
        %v694 = vadd.f32 %v662, 1.0
        %v695 = vadd.f32 %v663, 1.0
        %v696 = vadd.f32 %v664, 1.0
        %v697 = vadd.f32 %v665, 1.0
        %v698 = vadd.f32 %v666, 1.0
        %v699 = vmul.f32 %v603, %v667
        %v700 = vmul.f32 %v604, %v668
        %v701 = vmul.f32 %v605, %v669
        %v702 = vmul.f32 %v606, %v670
        %v703 = vmul.f32 %v607, %v671
        %v704 = vmul.f32 %v608, %v672
        %v705 = vmul.f32 %v609, %v673
        %v706 = vmul.f32 %v610, %v674
        %v707 = vmul.f32 %v611, %v675
        %v708 = vmul.f32 %v612, %v676
        %v709 = vmul.f32 %v613, %v677
        %v710 = vmul.f32 %v614, %v678
        %v711 = vmul.f32 %v615, %v679
        %v712 = vmul.f32 %v616, %v680
        %v713 = vmul.f32 %v617, %v681
        %v714 = vmul.f32 %v618, %v682
        %v715 = vmul.f32 %v619, %v683
        %v716 = vmul.f32 %v620, %v684
        %v717 = vmul.f32 %v621, %v685
        %v718 = vmul.f32 %v622, %v686
        %v719 = vmul.f32 %v623, %v687
        %v720 = vmul.f32 %v624, %v688
        %v721 = vmul.f32 %v625, %v689
        %v722 = vmul.f32 %v626, %v690
        %v723 = vmul.f32 %v627, %v691
        %v724 = vmul.f32 %v628, %v692
        %v725 = vmul.f32 %v629, %v693
        %v726 = vmul.f32 %v630, %v694
        %v727 = vmul.f32 %v631, %v695
        %v728 = vmul.f32 %v632, %v696
        %v729 = vmul.f32 %v633, %v697
        %v730 = vmul.f32 %v634, %v698
        %vm731 = vcmask 64512
        %732 = vst.msk [vmem:[#allocation2] sm:$0xff] %vm731, 0.0
        %733 = vst.msk [vmem:[#allocation2 + $0x8] sm:$0xff] %vm731, 0.0
        %734 = vst.msk [vmem:[#allocation2 + $0x10] sm:$0xff] %vm731, 0.0
        %vm735 = vcmask 57344
        %736 = vst.msk [vmem:[#allocation2 + $0x18] sm:$0x1] %vm735, 0.0
        %s737 = scalar_lea.vmem [#allocation2], 544
        %738 = vst.msk [vmem:[%s737] sm:$0xff] %vm731, 0.0
        %739 = vst.msk [vmem:[%s737 + $0x8] sm:$0xff] %vm731, 0.0
        %740 = vst.msk [vmem:[%s737 + $0x10] sm:$0xff] %vm731, 0.0
        %741 = vst.msk [vmem:[%s737 + $0x18] sm:$0x1] %vm735, 0.0
        %s742 = scalar_lea.vmem [#allocation2], 32
        %743 = vst.msk [vmem:[%s742 + $0x7] sm:$0x1] %vm735, 0.0
        %744 = vst.msk [vmem:[%s742 + $0x27] sm:$0x1] %vm735, 0.0
        %745 = vst.msk [vmem:[%s742 + $0x47] sm:$0x1] %vm735, 0.0
        %746 = vst.msk [vmem:[%s742 + $0x67] sm:$0x1] %vm735, 0.0
        %747 = vst.msk [vmem:[%s742 + $0x87] sm:$0x1] %vm735, 0.0
        %748 = vst.msk [vmem:[%s742 + $0xa7] sm:$0x1] %vm735, 0.0
        %749 = vst.msk [vmem:[%s742 + $0xc7] sm:$0x1] %vm735, 0.0
        %750 = vst.msk [vmem:[%s742 + $0xe7] sm:$0x1] %vm735, 0.0
        %751 = vst.msk [vmem:[%s742 + $0x107] sm:$0x1] %vm735, 0.0
        %752 = vst.msk [vmem:[%s742 + $0x127] sm:$0x1] %vm735, 0.0
        %753 = vst.msk [vmem:[%s742 + $0x147] sm:$0x1] %vm735, 0.0
        %754 = vst.msk [vmem:[%s742 + $0x167] sm:$0x1] %vm735, 0.0
        %755 = vst.msk [vmem:[%s742 + $0x187] sm:$0x1] %vm735, 0.0
        %756 = vst.msk [vmem:[%s742 + $0x1a7] sm:$0x1] %vm735, 0.0
        %757 = vst.msk [vmem:[%s742 + $0x1c7] sm:$0x1] %vm735, 0.0
        %758 = vst.msk [vmem:[%s742 + $0x1e7] sm:$0x1] %vm735, 0.0
        %759 = vst.msk [vmem:[%s742 + $0x18] sm:$0x1] %vm735, 0.0
        %760 = vst.msk [vmem:[%s742 + $0x38] sm:$0x1] %vm735, 0.0
        %761 = vst.msk [vmem:[%s742 + $0x58] sm:$0x1] %vm735, 0.0
        %762 = vst.msk [vmem:[%s742 + $0x78] sm:$0x1] %vm735, 0.0
        %763 = vst.msk [vmem:[%s742 + $0x98] sm:$0x1] %vm735, 0.0
        %764 = vst.msk [vmem:[%s742 + $0xb8] sm:$0x1] %vm735, 0.0
        %765 = vst.msk [vmem:[%s742 + $0xd8] sm:$0x1] %vm735, 0.0
        %766 = vst.msk [vmem:[%s742 + $0xf8] sm:$0x1] %vm735, 0.0
        %767 = vst.msk [vmem:[%s742 + $0x118] sm:$0x1] %vm735, 0.0
        %768 = vst.msk [vmem:[%s742 + $0x138] sm:$0x1] %vm735, 0.0
        %769 = vst.msk [vmem:[%s742 + $0x158] sm:$0x1] %vm735, 0.0
        %770 = vst.msk [vmem:[%s742 + $0x178] sm:$0x1] %vm735, 0.0
        %771 = vst.msk [vmem:[%s742 + $0x198] sm:$0x1] %vm735, 0.0
        %772 = vst.msk [vmem:[%s742 + $0x1b8] sm:$0x1] %vm735, 0.0
        %773 = vst.msk [vmem:[%s742 + $0x1d8] sm:$0x1] %vm735, 0.0
        %774 = vst.msk [vmem:[%s742 + $0x1f8] sm:$0x1] %vm735, 0.0
        %775 = vst.msk [vmem:[%s742 + $0x8] sm:$0xff] %vm731, %v699
        %776 = vst.msk [vmem:[%s742 + $0x10] sm:$0xff] %vm731, %v700
        %777 = vst.msk [vmem:[%s742 + $0x28] sm:$0xff] %vm731, %v701
        %778 = vst.msk [vmem:[%s742 + $0x30] sm:$0xff] %vm731, %v702
        %779 = vst.msk [vmem:[%s742 + $0x48] sm:$0xff] %vm731, %v703
        %780 = vst.msk [vmem:[%s742 + $0x50] sm:$0xff] %vm731, %v704
        %781 = vst.msk [vmem:[%s742 + $0x68] sm:$0xff] %vm731, %v705
        %782 = vst.msk [vmem:[%s742 + $0x70] sm:$0xff] %vm731, %v706
        %783 = vst.msk [vmem:[%s742 + $0x88] sm:$0xff] %vm731, %v707
        %784 = vst.msk [vmem:[%s742 + $0x90] sm:$0xff] %vm731, %v708
        %785 = vst.msk [vmem:[%s742 + $0xa8] sm:$0xff] %vm731, %v709
        %786 = vst.msk [vmem:[%s742 + $0xb0] sm:$0xff] %vm731, %v710
        %787 = vst.msk [vmem:[%s742 + $0xc8] sm:$0xff] %vm731, %v711
        %788 = vst.msk [vmem:[%s742 + $0xd0] sm:$0xff] %vm731, %v712
        %789 = vst.msk [vmem:[%s742 + $0xe8] sm:$0xff] %vm731, %v713
        %790 = vst.msk [vmem:[%s742 + $0xf0] sm:$0xff] %vm731, %v714
        %791 = vst.msk [vmem:[%s742 + $0x108] sm:$0xff] %vm731, %v715
        %792 = vst.msk [vmem:[%s742 + $0x110] sm:$0xff] %vm731, %v716
        %793 = vst.msk [vmem:[%s742 + $0x128] sm:$0xff] %vm731, %v717
        %794 = vst.msk [vmem:[%s742 + $0x130] sm:$0xff] %vm731, %v718
        %795 = vst.msk [vmem:[%s742 + $0x148] sm:$0xff] %vm731, %v719
        %796 = vst.msk [vmem:[%s742 + $0x150] sm:$0xff] %vm731, %v720
        %797 = vst.msk [vmem:[%s742 + $0x168] sm:$0xff] %vm731, %v721
        %798 = vst.msk [vmem:[%s742 + $0x170] sm:$0xff] %vm731, %v722
        %799 = vst.msk [vmem:[%s742 + $0x188] sm:$0xff] %vm731, %v723
        %800 = vst.msk [vmem:[%s742 + $0x190] sm:$0xff] %vm731, %v724
        %801 = vst.msk [vmem:[%s742 + $0x1a8] sm:$0xff] %vm731, %v725
        %802 = vst.msk [vmem:[%s742 + $0x1b0] sm:$0xff] %vm731, %v726
        %803 = vst.msk [vmem:[%s742 + $0x1c8] sm:$0xff] %vm731, %v727
        %804 = vst.msk [vmem:[%s742 + $0x1d0] sm:$0xff] %vm731, %v728
        %805 = vst.msk [vmem:[%s742 + $0x1e8] sm:$0xff] %vm731, %v729
        %806 = vst.msk [vmem:[%s742 + $0x1f0] sm:$0xff] %vm731, %v730
        %v807 = vld [vmem:[#allocation2 + $0x7] sm:$0xff]
        %v808 = vld [vmem:[#allocation2 + $0xf] sm:$0xff]
        %v809 = vld [vmem:[#allocation2 + $0x27] sm:$0xff]
        %v810 = vld [vmem:[#allocation2 + $0x2f] sm:$0xff]
        %v811 = vld [vmem:[#allocation2 + $0x47] sm:$0xff]
        %v812 = vld [vmem:[#allocation2 + $0x4f] sm:$0xff]
        %v813 = vld [vmem:[#allocation2 + $0x67] sm:$0xff]
        %v814 = vld [vmem:[#allocation2 + $0x6f] sm:$0xff]
        %v815 = vld [vmem:[#allocation2 + $0x87] sm:$0xff]
        %v816 = vld [vmem:[#allocation2 + $0x8f] sm:$0xff]
        %v817 = vld [vmem:[#allocation2 + $0xa7] sm:$0xff]
        %v818 = vld [vmem:[#allocation2 + $0xaf] sm:$0xff]
        %v819 = vld [vmem:[#allocation2 + $0xc7] sm:$0xff]
        %v820 = vld [vmem:[#allocation2 + $0xcf] sm:$0xff]
        %v821 = vld [vmem:[#allocation2 + $0xe7] sm:$0xff]
        %v822 = vld [vmem:[#allocation2 + $0xef] sm:$0xff]
        %v823 = vld [vmem:[#allocation2 + $0x107] sm:$0xff]
        %v824 = vld [vmem:[#allocation2 + $0x10f] sm:$0xff]
        %v825 = vld [vmem:[#allocation2 + $0x127] sm:$0xff]
        %v826 = vld [vmem:[#allocation2 + $0x12f] sm:$0xff]
        %v827 = vld [vmem:[#allocation2 + $0x147] sm:$0xff]
        %v828 = vld [vmem:[#allocation2 + $0x14f] sm:$0xff]
        %v829 = vld [vmem:[#allocation2 + $0x167] sm:$0xff]
        %v830 = vld [vmem:[#allocation2 + $0x16f] sm:$0xff]
        %v831 = vld [vmem:[#allocation2 + $0x187] sm:$0xff]
        %v832 = vld [vmem:[#allocation2 + $0x18f] sm:$0xff]
        %v833 = vld [vmem:[#allocation2 + $0x1a7] sm:$0xff]
        %v834 = vld [vmem:[#allocation2 + $0x1af] sm:$0xff]
        %v835 = vld [vmem:[#allocation2 + $0x1c7] sm:$0xff]
        %v836 = vld [vmem:[#allocation2 + $0x1cf] sm:$0xff]
        %v837 = vld [vmem:[#allocation2 + $0x1e7] sm:$0xff]
        %v838 = vld [vmem:[#allocation2 + $0x1ef] sm:$0xff]
        %v839 = vld [vmem:[%s3] sm:$0x1]
        %v840 = vlaneseq
        %v841 = vshrl.u32 %v840, 7
        %v842 = vsub.s32 0, %v841
        %v843 = vrot.slane %v839, %v842
        %v844 = vmul.f32 %v807, %v843
        %v845 = vmul.f32 %v808, %v843
        %v846 = vmul.f32 %v809, %v843
        %v847 = vmul.f32 %v810, %v843
        %v848 = vmul.f32 %v811, %v843
        %v849 = vmul.f32 %v812, %v843
        %v850 = vmul.f32 %v813, %v843
        %v851 = vmul.f32 %v814, %v843
        %v852 = vmul.f32 %v815, %v843
        %v853 = vmul.f32 %v816, %v843
        %v854 = vmul.f32 %v817, %v843
        %v855 = vmul.f32 %v818, %v843
        %v856 = vmul.f32 %v819, %v843
        %v857 = vmul.f32 %v820, %v843
        %v858 = vmul.f32 %v821, %v843
        %v859 = vmul.f32 %v822, %v843
        %v860 = vmul.f32 %v823, %v843
        %v861 = vmul.f32 %v824, %v843
        %v862 = vmul.f32 %v825, %v843
        %v863 = vmul.f32 %v826, %v843
        %v864 = vmul.f32 %v827, %v843
        %v865 = vmul.f32 %v828, %v843
        %v866 = vmul.f32 %v829, %v843
        %v867 = vmul.f32 %v830, %v843
        %v868 = vmul.f32 %v831, %v843
        %v869 = vmul.f32 %v832, %v843
        %v870 = vmul.f32 %v833, %v843
        %v871 = vmul.f32 %v834, %v843
        %v872 = vmul.f32 %v835, %v843
        %v873 = vmul.f32 %v836, %v843
        %v874 = vmul.f32 %v837, %v843
        %v875 = vmul.f32 %v838, %v843
        %v876 = vadd.f32 %v844, 0.0
        %v877 = vadd.f32 %v845, 0.0
        %v878 = vadd.f32 %v846, 0.0
        %v879 = vadd.f32 %v847, 0.0
        %v880 = vadd.f32 %v848, 0.0
        %v881 = vadd.f32 %v849, 0.0
        %v882 = vadd.f32 %v850, 0.0
        %v883 = vadd.f32 %v851, 0.0
        %v884 = vadd.f32 %v852, 0.0
        %v885 = vadd.f32 %v853, 0.0
        %v886 = vadd.f32 %v854, 0.0
        %v887 = vadd.f32 %v855, 0.0
        %v888 = vadd.f32 %v856, 0.0
        %v889 = vadd.f32 %v857, 0.0
        %v890 = vadd.f32 %v858, 0.0
        %v891 = vadd.f32 %v859, 0.0
        %v892 = vadd.f32 %v860, 0.0
        %v893 = vadd.f32 %v861, 0.0
        %v894 = vadd.f32 %v862, 0.0
        %v895 = vadd.f32 %v863, 0.0
        %v896 = vadd.f32 %v864, 0.0
        %v897 = vadd.f32 %v865, 0.0
        %v898 = vadd.f32 %v866, 0.0
        %v899 = vadd.f32 %v867, 0.0
        %v900 = vadd.f32 %v868, 0.0
        %v901 = vadd.f32 %v869, 0.0
        %v902 = vadd.f32 %v870, 0.0
        %v903 = vadd.f32 %v871, 0.0
        %v904 = vadd.f32 %v872, 0.0
        %v905 = vadd.f32 %v873, 0.0
        %v906 = vadd.f32 %v874, 0.0
        %v907 = vadd.f32 %v875, 0.0
        %v908 = vld [vmem:[#allocation2 + $0x8] sm:$0xff]
        %v909 = vld [vmem:[#allocation2 + $0x10] sm:$0xff]
        %v910 = vld [vmem:[#allocation2 + $0x28] sm:$0xff]
        %v911 = vld [vmem:[#allocation2 + $0x30] sm:$0xff]
        %v912 = vld [vmem:[#allocation2 + $0x48] sm:$0xff]
        %v913 = vld [vmem:[#allocation2 + $0x50] sm:$0xff]
        %v914 = vld [vmem:[#allocation2 + $0x68] sm:$0xff]
        %v915 = vld [vmem:[#allocation2 + $0x70] sm:$0xff]
        %v916 = vld [vmem:[#allocation2 + $0x88] sm:$0xff]
        %v917 = vld [vmem:[#allocation2 + $0x90] sm:$0xff]
        %v918 = vld [vmem:[#allocation2 + $0xa8] sm:$0xff]
        %v919 = vld [vmem:[#allocation2 + $0xb0] sm:$0xff]
        %v920 = vld [vmem:[#allocation2 + $0xc8] sm:$0xff]
        %v921 = vld [vmem:[#allocation2 + $0xd0] sm:$0xff]
        %v922 = vld [vmem:[#allocation2 + $0xe8] sm:$0xff]
        %v923 = vld [vmem:[#allocation2 + $0xf0] sm:$0xff]
        %v924 = vld [vmem:[#allocation2 + $0x108] sm:$0xff]
        %v925 = vld [vmem:[#allocation2 + $0x110] sm:$0xff]
        %v926 = vld [vmem:[#allocation2 + $0x128] sm:$0xff]
        %v927 = vld [vmem:[#allocation2 + $0x130] sm:$0xff]
        %v928 = vld [vmem:[#allocation2 + $0x148] sm:$0xff]
        %v929 = vld [vmem:[#allocation2 + $0x150] sm:$0xff]
        %v930 = vld [vmem:[#allocation2 + $0x168] sm:$0xff]
        %v931 = vld [vmem:[#allocation2 + $0x170] sm:$0xff]
        %v932 = vld [vmem:[#allocation2 + $0x188] sm:$0xff]
        %v933 = vld [vmem:[#allocation2 + $0x190] sm:$0xff]
        %v934 = vld [vmem:[#allocation2 + $0x1a8] sm:$0xff]
        %v935 = vld [vmem:[#allocation2 + $0x1b0] sm:$0xff]
        %v936 = vld [vmem:[#allocation2 + $0x1c8] sm:$0xff]
        %v937 = vld [vmem:[#allocation2 + $0x1d0] sm:$0xff]
        %v938 = vld [vmem:[#allocation2 + $0x1e8] sm:$0xff]
        %v939 = vld [vmem:[#allocation2 + $0x1f0] sm:$0xff]
        %v940 = vld [vmem:[%s3 + $0x1] sm:$0x1]
        %v941 = vlaneseq
        %v942 = vshrl.u32 %v941, 7
        %v943 = vsub.s32 0, %v942
        %v944 = vrot.slane %v940, %v943
        %v945 = vmul.f32 %v908, %v944
        %v946 = vmul.f32 %v909, %v944
        %v947 = vmul.f32 %v910, %v944
        %v948 = vmul.f32 %v911, %v944
        %v949 = vmul.f32 %v912, %v944
        %v950 = vmul.f32 %v913, %v944
        %v951 = vmul.f32 %v914, %v944
        %v952 = vmul.f32 %v915, %v944
        %v953 = vmul.f32 %v916, %v944
        %v954 = vmul.f32 %v917, %v944
        %v955 = vmul.f32 %v918, %v944
        %v956 = vmul.f32 %v919, %v944
        %v957 = vmul.f32 %v920, %v944
        %v958 = vmul.f32 %v921, %v944
        %v959 = vmul.f32 %v922, %v944
        %v960 = vmul.f32 %v923, %v944
        %v961 = vmul.f32 %v924, %v944
        %v962 = vmul.f32 %v925, %v944
        %v963 = vmul.f32 %v926, %v944
        %v964 = vmul.f32 %v927, %v944
        %v965 = vmul.f32 %v928, %v944
        %v966 = vmul.f32 %v929, %v944
        %v967 = vmul.f32 %v930, %v944
        %v968 = vmul.f32 %v931, %v944
        %v969 = vmul.f32 %v932, %v944
        %v970 = vmul.f32 %v933, %v944
        %v971 = vmul.f32 %v934, %v944
        %v972 = vmul.f32 %v935, %v944
        %v973 = vmul.f32 %v936, %v944
        %v974 = vmul.f32 %v937, %v944
        %v975 = vmul.f32 %v938, %v944
        %v976 = vmul.f32 %v939, %v944
        %v977 = vadd.f32 %v876, %v945
        %v978 = vadd.f32 %v877, %v946
        %v979 = vadd.f32 %v878, %v947
        %v980 = vadd.f32 %v879, %v948
        %v981 = vadd.f32 %v880, %v949
        %v982 = vadd.f32 %v881, %v950
        %v983 = vadd.f32 %v882, %v951
        %v984 = vadd.f32 %v883, %v952
        %v985 = vadd.f32 %v884, %v953
        %v986 = vadd.f32 %v885, %v954
        %v987 = vadd.f32 %v886, %v955
        %v988 = vadd.f32 %v887, %v956
        %v989 = vadd.f32 %v888, %v957
        %v990 = vadd.f32 %v889, %v958
        %v991 = vadd.f32 %v890, %v959
        %v992 = vadd.f32 %v891, %v960
        %v993 = vadd.f32 %v892, %v961
        %v994 = vadd.f32 %v893, %v962
        %v995 = vadd.f32 %v894, %v963
        %v996 = vadd.f32 %v895, %v964
        %v997 = vadd.f32 %v896, %v965
        %v998 = vadd.f32 %v897, %v966
        %v999 = vadd.f32 %v898, %v967
        %v1000 = vadd.f32 %v899, %v968
        %v1001 = vadd.f32 %v900, %v969
        %v1002 = vadd.f32 %v901, %v970
        %v1003 = vadd.f32 %v902, %v971
        %v1004 = vadd.f32 %v903, %v972
        %v1005 = vadd.f32 %v904, %v973
        %v1006 = vadd.f32 %v905, %v974
        %v1007 = vadd.f32 %v906, %v975
        %v1008 = vadd.f32 %v907, %v976
        %v1009 = vld [vmem:[#allocation2 + $0x9] sm:$0xff]
        %v1010 = vld [vmem:[#allocation2 + $0x11] sm:$0xff]
        %v1011 = vld [vmem:[#allocation2 + $0x29] sm:$0xff]
        %v1012 = vld [vmem:[#allocation2 + $0x31] sm:$0xff]
        %v1013 = vld [vmem:[#allocation2 + $0x49] sm:$0xff]
        %v1014 = vld [vmem:[#allocation2 + $0x51] sm:$0xff]
        %v1015 = vld [vmem:[#allocation2 + $0x69] sm:$0xff]
        %v1016 = vld [vmem:[#allocation2 + $0x71] sm:$0xff]
        %v1017 = vld [vmem:[#allocation2 + $0x89] sm:$0xff]
        %v1018 = vld [vmem:[#allocation2 + $0x91] sm:$0xff]
        %v1019 = vld [vmem:[#allocation2 + $0xa9] sm:$0xff]
        %v1020 = vld [vmem:[#allocation2 + $0xb1] sm:$0xff]
        %v1021 = vld [vmem:[#allocation2 + $0xc9] sm:$0xff]
        %v1022 = vld [vmem:[#allocation2 + $0xd1] sm:$0xff]
        %v1023 = vld [vmem:[#allocation2 + $0xe9] sm:$0xff]
        %v1024 = vld [vmem:[#allocation2 + $0xf1] sm:$0xff]
        %v1025 = vld [vmem:[#allocation2 + $0x109] sm:$0xff]
        %v1026 = vld [vmem:[#allocation2 + $0x111] sm:$0xff]
        %v1027 = vld [vmem:[#allocation2 + $0x129] sm:$0xff]
        %v1028 = vld [vmem:[#allocation2 + $0x131] sm:$0xff]
        %v1029 = vld [vmem:[#allocation2 + $0x149] sm:$0xff]
        %v1030 = vld [vmem:[#allocation2 + $0x151] sm:$0xff]
        %v1031 = vld [vmem:[#allocation2 + $0x169] sm:$0xff]
        %v1032 = vld [vmem:[#allocation2 + $0x171] sm:$0xff]
        %v1033 = vld [vmem:[#allocation2 + $0x189] sm:$0xff]
        %v1034 = vld [vmem:[#allocation2 + $0x191] sm:$0xff]
        %v1035 = vld [vmem:[#allocation2 + $0x1a9] sm:$0xff]
        %v1036 = vld [vmem:[#allocation2 + $0x1b1] sm:$0xff]
        %v1037 = vld [vmem:[#allocation2 + $0x1c9] sm:$0xff]
        %v1038 = vld [vmem:[#allocation2 + $0x1d1] sm:$0xff]
        %v1039 = vld [vmem:[#allocation2 + $0x1e9] sm:$0xff]
        %v1040 = vld [vmem:[#allocation2 + $0x1f1] sm:$0xff]
        %v1041 = vld [vmem:[%s3 + $0x2] sm:$0x1]
        %v1042 = vlaneseq
        %v1043 = vshrl.u32 %v1042, 7
        %v1044 = vsub.s32 0, %v1043
        %v1045 = vrot.slane %v1041, %v1044
        %v1046 = vmul.f32 %v1009, %v1045
        %v1047 = vmul.f32 %v1010, %v1045
        %v1048 = vmul.f32 %v1011, %v1045
        %v1049 = vmul.f32 %v1012, %v1045
        %v1050 = vmul.f32 %v1013, %v1045
        %v1051 = vmul.f32 %v1014, %v1045
        %v1052 = vmul.f32 %v1015, %v1045
        %v1053 = vmul.f32 %v1016, %v1045
        %v1054 = vmul.f32 %v1017, %v1045
        %v1055 = vmul.f32 %v1018, %v1045
        %v1056 = vmul.f32 %v1019, %v1045
        %v1057 = vmul.f32 %v1020, %v1045
        %v1058 = vmul.f32 %v1021, %v1045
        %v1059 = vmul.f32 %v1022, %v1045
        %v1060 = vmul.f32 %v1023, %v1045
        %v1061 = vmul.f32 %v1024, %v1045
        %v1062 = vmul.f32 %v1025, %v1045
        %v1063 = vmul.f32 %v1026, %v1045
        %v1064 = vmul.f32 %v1027, %v1045
        %v1065 = vmul.f32 %v1028, %v1045
        %v1066 = vmul.f32 %v1029, %v1045
        %v1067 = vmul.f32 %v1030, %v1045
        %v1068 = vmul.f32 %v1031, %v1045
        %v1069 = vmul.f32 %v1032, %v1045
        %v1070 = vmul.f32 %v1033, %v1045
        %v1071 = vmul.f32 %v1034, %v1045
        %v1072 = vmul.f32 %v1035, %v1045
        %v1073 = vmul.f32 %v1036, %v1045
        %v1074 = vmul.f32 %v1037, %v1045
        %v1075 = vmul.f32 %v1038, %v1045
        %v1076 = vmul.f32 %v1039, %v1045
        %v1077 = vmul.f32 %v1040, %v1045
        %v1078 = vadd.f32 %v977, %v1046
        %v1079 = vadd.f32 %v978, %v1047
        %v1080 = vadd.f32 %v979, %v1048
        %v1081 = vadd.f32 %v980, %v1049
        %v1082 = vadd.f32 %v981, %v1050
        %v1083 = vadd.f32 %v982, %v1051
        %v1084 = vadd.f32 %v983, %v1052
        %v1085 = vadd.f32 %v984, %v1053
        %v1086 = vadd.f32 %v985, %v1054
        %v1087 = vadd.f32 %v986, %v1055
        %v1088 = vadd.f32 %v987, %v1056
        %v1089 = vadd.f32 %v988, %v1057
        %v1090 = vadd.f32 %v989, %v1058
        %v1091 = vadd.f32 %v990, %v1059
        %v1092 = vadd.f32 %v991, %v1060
        %v1093 = vadd.f32 %v992, %v1061
        %v1094 = vadd.f32 %v993, %v1062
        %v1095 = vadd.f32 %v994, %v1063
        %v1096 = vadd.f32 %v995, %v1064
        %v1097 = vadd.f32 %v996, %v1065
        %v1098 = vadd.f32 %v997, %v1066
        %v1099 = vadd.f32 %v998, %v1067
        %v1100 = vadd.f32 %v999, %v1068
        %v1101 = vadd.f32 %v1000, %v1069
        %v1102 = vadd.f32 %v1001, %v1070
        %v1103 = vadd.f32 %v1002, %v1071
        %v1104 = vadd.f32 %v1003, %v1072
        %v1105 = vadd.f32 %v1004, %v1073
        %v1106 = vadd.f32 %v1005, %v1074
        %v1107 = vadd.f32 %v1006, %v1075
        %v1108 = vadd.f32 %v1007, %v1076
        %v1109 = vadd.f32 %v1008, %v1077
        %v1110 = vld [vmem:[%s742 + $0x7] sm:$0xff]
        %v1111 = vld [vmem:[%s742 + $0xf] sm:$0xff]
        %v1112 = vld [vmem:[%s742 + $0x27] sm:$0xff]
        %v1113 = vld [vmem:[%s742 + $0x2f] sm:$0xff]
        %v1114 = vld [vmem:[%s742 + $0x47] sm:$0xff]
        %v1115 = vld [vmem:[%s742 + $0x4f] sm:$0xff]
        %v1116 = vld [vmem:[%s742 + $0x67] sm:$0xff]
        %v1117 = vld [vmem:[%s742 + $0x6f] sm:$0xff]
        %v1118 = vld [vmem:[%s742 + $0x87] sm:$0xff]
        %v1119 = vld [vmem:[%s742 + $0x8f] sm:$0xff]
        %v1120 = vld [vmem:[%s742 + $0xa7] sm:$0xff]
        %v1121 = vld [vmem:[%s742 + $0xaf] sm:$0xff]
        %v1122 = vld [vmem:[%s742 + $0xc7] sm:$0xff]
        %v1123 = vld [vmem:[%s742 + $0xcf] sm:$0xff]
        %v1124 = vld [vmem:[%s742 + $0xe7] sm:$0xff]
        %v1125 = vld [vmem:[%s742 + $0xef] sm:$0xff]
        %v1126 = vld [vmem:[%s742 + $0x107] sm:$0xff]
        %v1127 = vld [vmem:[%s742 + $0x10f] sm:$0xff]
        %v1128 = vld [vmem:[%s742 + $0x127] sm:$0xff]
        %v1129 = vld [vmem:[%s742 + $0x12f] sm:$0xff]
        %v1130 = vld [vmem:[%s742 + $0x147] sm:$0xff]
        %v1131 = vld [vmem:[%s742 + $0x14f] sm:$0xff]
        %v1132 = vld [vmem:[%s742 + $0x167] sm:$0xff]
        %v1133 = vld [vmem:[%s742 + $0x16f] sm:$0xff]
        %v1134 = vld [vmem:[%s742 + $0x187] sm:$0xff]
        %v1135 = vld [vmem:[%s742 + $0x18f] sm:$0xff]
        %v1136 = vld [vmem:[%s742 + $0x1a7] sm:$0xff]
        %v1137 = vld [vmem:[%s742 + $0x1af] sm:$0xff]
        %v1138 = vld [vmem:[%s742 + $0x1c7] sm:$0xff]
        %v1139 = vld [vmem:[%s742 + $0x1cf] sm:$0xff]
        %v1140 = vld [vmem:[%s742 + $0x1e7] sm:$0xff]
        %v1141 = vld [vmem:[%s742 + $0x1ef] sm:$0xff]
        %v1142 = vld [vmem:[%s3 + $0x3] sm:$0x1]
        %v1143 = vlaneseq
        %v1144 = vshrl.u32 %v1143, 7
        %v1145 = vsub.s32 0, %v1144
        %v1146 = vrot.slane %v1142, %v1145
        %v1147 = vmul.f32 %v1110, %v1146
        %v1148 = vmul.f32 %v1111, %v1146
        %v1149 = vmul.f32 %v1112, %v1146
        %v1150 = vmul.f32 %v1113, %v1146
        %v1151 = vmul.f32 %v1114, %v1146
        %v1152 = vmul.f32 %v1115, %v1146
        %v1153 = vmul.f32 %v1116, %v1146
        %v1154 = vmul.f32 %v1117, %v1146
        %v1155 = vmul.f32 %v1118, %v1146
        %v1156 = vmul.f32 %v1119, %v1146
        %v1157 = vmul.f32 %v1120, %v1146
        %v1158 = vmul.f32 %v1121, %v1146
        %v1159 = vmul.f32 %v1122, %v1146
        %v1160 = vmul.f32 %v1123, %v1146
        %v1161 = vmul.f32 %v1124, %v1146
        %v1162 = vmul.f32 %v1125, %v1146
        %v1163 = vmul.f32 %v1126, %v1146
        %v1164 = vmul.f32 %v1127, %v1146
        %v1165 = vmul.f32 %v1128, %v1146
        %v1166 = vmul.f32 %v1129, %v1146
        %v1167 = vmul.f32 %v1130, %v1146
        %v1168 = vmul.f32 %v1131, %v1146
        %v1169 = vmul.f32 %v1132, %v1146
        %v1170 = vmul.f32 %v1133, %v1146
        %v1171 = vmul.f32 %v1134, %v1146
        %v1172 = vmul.f32 %v1135, %v1146
        %v1173 = vmul.f32 %v1136, %v1146
        %v1174 = vmul.f32 %v1137, %v1146
        %v1175 = vmul.f32 %v1138, %v1146
        %v1176 = vmul.f32 %v1139, %v1146
        %v1177 = vmul.f32 %v1140, %v1146
        %v1178 = vmul.f32 %v1141, %v1146
        %v1179 = vadd.f32 %v1078, %v1147
        %v1180 = vadd.f32 %v1079, %v1148
        %v1181 = vadd.f32 %v1080, %v1149
        %v1182 = vadd.f32 %v1081, %v1150
        %v1183 = vadd.f32 %v1082, %v1151
        %v1184 = vadd.f32 %v1083, %v1152
        %v1185 = vadd.f32 %v1084, %v1153
        %v1186 = vadd.f32 %v1085, %v1154
        %v1187 = vadd.f32 %v1086, %v1155
        %v1188 = vadd.f32 %v1087, %v1156
        %v1189 = vadd.f32 %v1088, %v1157
        %v1190 = vadd.f32 %v1089, %v1158
        %v1191 = vadd.f32 %v1090, %v1159
        %v1192 = vadd.f32 %v1091, %v1160
        %v1193 = vadd.f32 %v1092, %v1161
        %v1194 = vadd.f32 %v1093, %v1162
        %v1195 = vadd.f32 %v1094, %v1163
        %v1196 = vadd.f32 %v1095, %v1164
        %v1197 = vadd.f32 %v1096, %v1165
        %v1198 = vadd.f32 %v1097, %v1166
        %v1199 = vadd.f32 %v1098, %v1167
        %v1200 = vadd.f32 %v1099, %v1168
        %v1201 = vadd.f32 %v1100, %v1169
        %v1202 = vadd.f32 %v1101, %v1170
        %v1203 = vadd.f32 %v1102, %v1171
        %v1204 = vadd.f32 %v1103, %v1172
        %v1205 = vadd.f32 %v1104, %v1173
        %v1206 = vadd.f32 %v1105, %v1174
        %v1207 = vadd.f32 %v1106, %v1175
        %v1208 = vadd.f32 %v1107, %v1176
        %v1209 = vadd.f32 %v1108, %v1177
        %v1210 = vadd.f32 %v1109, %v1178
        %v1211 = vld [vmem:[%s742 + $0x8] sm:$0xff]
        %v1212 = vld [vmem:[%s742 + $0x10] sm:$0xff]
        %v1213 = vld [vmem:[%s742 + $0x28] sm:$0xff]
        %v1214 = vld [vmem:[%s742 + $0x30] sm:$0xff]
        %v1215 = vld [vmem:[%s742 + $0x48] sm:$0xff]
        %v1216 = vld [vmem:[%s742 + $0x50] sm:$0xff]
        %v1217 = vld [vmem:[%s742 + $0x68] sm:$0xff]
        %v1218 = vld [vmem:[%s742 + $0x70] sm:$0xff]
        %v1219 = vld [vmem:[%s742 + $0x88] sm:$0xff]
        %v1220 = vld [vmem:[%s742 + $0x90] sm:$0xff]
        %v1221 = vld [vmem:[%s742 + $0xa8] sm:$0xff]
        %v1222 = vld [vmem:[%s742 + $0xb0] sm:$0xff]
        %v1223 = vld [vmem:[%s742 + $0xc8] sm:$0xff]
        %v1224 = vld [vmem:[%s742 + $0xd0] sm:$0xff]
        %v1225 = vld [vmem:[%s742 + $0xe8] sm:$0xff]
        %v1226 = vld [vmem:[%s742 + $0xf0] sm:$0xff]
        %v1227 = vld [vmem:[%s742 + $0x108] sm:$0xff]
        %v1228 = vld [vmem:[%s742 + $0x110] sm:$0xff]
        %v1229 = vld [vmem:[%s742 + $0x128] sm:$0xff]
        %v1230 = vld [vmem:[%s742 + $0x130] sm:$0xff]
        %v1231 = vld [vmem:[%s742 + $0x148] sm:$0xff]
        %v1232 = vld [vmem:[%s742 + $0x150] sm:$0xff]
        %v1233 = vld [vmem:[%s742 + $0x168] sm:$0xff]
        %v1234 = vld [vmem:[%s742 + $0x170] sm:$0xff]
        %v1235 = vld [vmem:[%s742 + $0x188] sm:$0xff]
        %v1236 = vld [vmem:[%s742 + $0x190] sm:$0xff]
        %v1237 = vld [vmem:[%s742 + $0x1a8] sm:$0xff]
        %v1238 = vld [vmem:[%s742 + $0x1b0] sm:$0xff]
        %v1239 = vld [vmem:[%s742 + $0x1c8] sm:$0xff]
        %v1240 = vld [vmem:[%s742 + $0x1d0] sm:$0xff]
        %v1241 = vld [vmem:[%s742 + $0x1e8] sm:$0xff]
        %v1242 = vld [vmem:[%s742 + $0x1f0] sm:$0xff]
        %v1243 = vld [vmem:[%s3 + $0x4] sm:$0x1]
        %v1244 = vlaneseq
        %v1245 = vshrl.u32 %v1244, 7
        %v1246 = vsub.s32 0, %v1245
        %v1247 = vrot.slane %v1243, %v1246
        %v1248 = vmul.f32 %v1211, %v1247
        %v1249 = vmul.f32 %v1212, %v1247
        %v1250 = vmul.f32 %v1213, %v1247
        %v1251 = vmul.f32 %v1214, %v1247
        %v1252 = vmul.f32 %v1215, %v1247
        %v1253 = vmul.f32 %v1216, %v1247
        %v1254 = vmul.f32 %v1217, %v1247
        %v1255 = vmul.f32 %v1218, %v1247
        %v1256 = vmul.f32 %v1219, %v1247
        %v1257 = vmul.f32 %v1220, %v1247
        %v1258 = vmul.f32 %v1221, %v1247
        %v1259 = vmul.f32 %v1222, %v1247
        %v1260 = vmul.f32 %v1223, %v1247
        %v1261 = vmul.f32 %v1224, %v1247
        %v1262 = vmul.f32 %v1225, %v1247
        %v1263 = vmul.f32 %v1226, %v1247
        %v1264 = vmul.f32 %v1227, %v1247
        %v1265 = vmul.f32 %v1228, %v1247
        %v1266 = vmul.f32 %v1229, %v1247
        %v1267 = vmul.f32 %v1230, %v1247
        %v1268 = vmul.f32 %v1231, %v1247
        %v1269 = vmul.f32 %v1232, %v1247
        %v1270 = vmul.f32 %v1233, %v1247
        %v1271 = vmul.f32 %v1234, %v1247
        %v1272 = vmul.f32 %v1235, %v1247
        %v1273 = vmul.f32 %v1236, %v1247
        %v1274 = vmul.f32 %v1237, %v1247
        %v1275 = vmul.f32 %v1238, %v1247
        %v1276 = vmul.f32 %v1239, %v1247
        %v1277 = vmul.f32 %v1240, %v1247
        %v1278 = vmul.f32 %v1241, %v1247
        %v1279 = vmul.f32 %v1242, %v1247
        %v1280 = vadd.f32 %v1179, %v1248
        %v1281 = vadd.f32 %v1180, %v1249
        %v1282 = vadd.f32 %v1181, %v1250
        %v1283 = vadd.f32 %v1182, %v1251
        %v1284 = vadd.f32 %v1183, %v1252
        %v1285 = vadd.f32 %v1184, %v1253
        %v1286 = vadd.f32 %v1185, %v1254
        %v1287 = vadd.f32 %v1186, %v1255
        %v1288 = vadd.f32 %v1187, %v1256
        %v1289 = vadd.f32 %v1188, %v1257
        %v1290 = vadd.f32 %v1189, %v1258
        %v1291 = vadd.f32 %v1190, %v1259
        %v1292 = vadd.f32 %v1191, %v1260
        %v1293 = vadd.f32 %v1192, %v1261
        %v1294 = vadd.f32 %v1193, %v1262
        %v1295 = vadd.f32 %v1194, %v1263
        %v1296 = vadd.f32 %v1195, %v1264
        %v1297 = vadd.f32 %v1196, %v1265
        %v1298 = vadd.f32 %v1197, %v1266
        %v1299 = vadd.f32 %v1198, %v1267
        %v1300 = vadd.f32 %v1199, %v1268
        %v1301 = vadd.f32 %v1200, %v1269
        %v1302 = vadd.f32 %v1201, %v1270
        %v1303 = vadd.f32 %v1202, %v1271
        %v1304 = vadd.f32 %v1203, %v1272
        %v1305 = vadd.f32 %v1204, %v1273
        %v1306 = vadd.f32 %v1205, %v1274
        %v1307 = vadd.f32 %v1206, %v1275
        %v1308 = vadd.f32 %v1207, %v1276
        %v1309 = vadd.f32 %v1208, %v1277
        %v1310 = vadd.f32 %v1209, %v1278
        %v1311 = vadd.f32 %v1210, %v1279
        %v1312 = vld [vmem:[%s742 + $0x9] sm:$0xff]
        %v1313 = vld [vmem:[%s742 + $0x11] sm:$0xff]
        %v1314 = vld [vmem:[%s742 + $0x29] sm:$0xff]
        %v1315 = vld [vmem:[%s742 + $0x31] sm:$0xff]
        %v1316 = vld [vmem:[%s742 + $0x49] sm:$0xff]
        %v1317 = vld [vmem:[%s742 + $0x51] sm:$0xff]
        %v1318 = vld [vmem:[%s742 + $0x69] sm:$0xff]
        %v1319 = vld [vmem:[%s742 + $0x71] sm:$0xff]
        %v1320 = vld [vmem:[%s742 + $0x89] sm:$0xff]
        %v1321 = vld [vmem:[%s742 + $0x91] sm:$0xff]
        %v1322 = vld [vmem:[%s742 + $0xa9] sm:$0xff]
        %v1323 = vld [vmem:[%s742 + $0xb1] sm:$0xff]
        %v1324 = vld [vmem:[%s742 + $0xc9] sm:$0xff]
        %v1325 = vld [vmem:[%s742 + $0xd1] sm:$0xff]
        %v1326 = vld [vmem:[%s742 + $0xe9] sm:$0xff]
        %v1327 = vld [vmem:[%s742 + $0xf1] sm:$0xff]
        %v1328 = vld [vmem:[%s742 + $0x109] sm:$0xff]
        %v1329 = vld [vmem:[%s742 + $0x111] sm:$0xff]
        %v1330 = vld [vmem:[%s742 + $0x129] sm:$0xff]
        %v1331 = vld [vmem:[%s742 + $0x131] sm:$0xff]
        %v1332 = vld [vmem:[%s742 + $0x149] sm:$0xff]
        %v1333 = vld [vmem:[%s742 + $0x151] sm:$0xff]
        %v1334 = vld [vmem:[%s742 + $0x169] sm:$0xff]
        %v1335 = vld [vmem:[%s742 + $0x171] sm:$0xff]
        %v1336 = vld [vmem:[%s742 + $0x189] sm:$0xff]
        %v1337 = vld [vmem:[%s742 + $0x191] sm:$0xff]
        %v1338 = vld [vmem:[%s742 + $0x1a9] sm:$0xff]
        %v1339 = vld [vmem:[%s742 + $0x1b1] sm:$0xff]
        %v1340 = vld [vmem:[%s742 + $0x1c9] sm:$0xff]
        %v1341 = vld [vmem:[%s742 + $0x1d1] sm:$0xff]
        %v1342 = vld [vmem:[%s742 + $0x1e9] sm:$0xff]
        %v1343 = vld [vmem:[%s742 + $0x1f1] sm:$0xff]
        %v1344 = vld [vmem:[%s3 + $0x5] sm:$0x1]
        %v1345 = vlaneseq
        %v1346 = vshrl.u32 %v1345, 7
        %v1347 = vsub.s32 0, %v1346
        %v1348 = vrot.slane %v1344, %v1347
        %v1349 = vmul.f32 %v1312, %v1348
        %v1350 = vmul.f32 %v1313, %v1348
        %v1351 = vmul.f32 %v1314, %v1348
        %v1352 = vmul.f32 %v1315, %v1348
        %v1353 = vmul.f32 %v1316, %v1348
        %v1354 = vmul.f32 %v1317, %v1348
        %v1355 = vmul.f32 %v1318, %v1348
        %v1356 = vmul.f32 %v1319, %v1348
        %v1357 = vmul.f32 %v1320, %v1348
        %v1358 = vmul.f32 %v1321, %v1348
        %v1359 = vmul.f32 %v1322, %v1348
        %v1360 = vmul.f32 %v1323, %v1348
        %v1361 = vmul.f32 %v1324, %v1348
        %v1362 = vmul.f32 %v1325, %v1348
        %v1363 = vmul.f32 %v1326, %v1348
        %v1364 = vmul.f32 %v1327, %v1348
        %v1365 = vmul.f32 %v1328, %v1348
        %v1366 = vmul.f32 %v1329, %v1348
        %v1367 = vmul.f32 %v1330, %v1348
        %v1368 = vmul.f32 %v1331, %v1348
        %v1369 = vmul.f32 %v1332, %v1348
        %v1370 = vmul.f32 %v1333, %v1348
        %v1371 = vmul.f32 %v1334, %v1348
        %v1372 = vmul.f32 %v1335, %v1348
        %v1373 = vmul.f32 %v1336, %v1348
        %v1374 = vmul.f32 %v1337, %v1348
        %v1375 = vmul.f32 %v1338, %v1348
        %v1376 = vmul.f32 %v1339, %v1348
        %v1377 = vmul.f32 %v1340, %v1348
        %v1378 = vmul.f32 %v1341, %v1348
        %v1379 = vmul.f32 %v1342, %v1348
        %v1380 = vmul.f32 %v1343, %v1348
        %v1381 = vadd.f32 %v1280, %v1349
        %v1382 = vadd.f32 %v1281, %v1350
        %v1383 = vadd.f32 %v1282, %v1351
        %v1384 = vadd.f32 %v1283, %v1352
        %v1385 = vadd.f32 %v1284, %v1353
        %v1386 = vadd.f32 %v1285, %v1354
        %v1387 = vadd.f32 %v1286, %v1355
        %v1388 = vadd.f32 %v1287, %v1356
        %v1389 = vadd.f32 %v1288, %v1357
        %v1390 = vadd.f32 %v1289, %v1358
        %v1391 = vadd.f32 %v1290, %v1359
        %v1392 = vadd.f32 %v1291, %v1360
        %v1393 = vadd.f32 %v1292, %v1361
        %v1394 = vadd.f32 %v1293, %v1362
        %v1395 = vadd.f32 %v1294, %v1363
        %v1396 = vadd.f32 %v1295, %v1364
        %v1397 = vadd.f32 %v1296, %v1365
        %v1398 = vadd.f32 %v1297, %v1366
        %v1399 = vadd.f32 %v1298, %v1367
        %v1400 = vadd.f32 %v1299, %v1368
        %v1401 = vadd.f32 %v1300, %v1369
        %v1402 = vadd.f32 %v1301, %v1370
        %v1403 = vadd.f32 %v1302, %v1371
        %v1404 = vadd.f32 %v1303, %v1372
        %v1405 = vadd.f32 %v1304, %v1373
        %v1406 = vadd.f32 %v1305, %v1374
        %v1407 = vadd.f32 %v1306, %v1375
        %v1408 = vadd.f32 %v1307, %v1376
        %v1409 = vadd.f32 %v1308, %v1377
        %v1410 = vadd.f32 %v1309, %v1378
        %v1411 = vadd.f32 %v1310, %v1379
        %v1412 = vadd.f32 %v1311, %v1380
        %s1413 = scalar_lea.vmem [#allocation2], 64
        %v1414 = vld [vmem:[%s1413 + $0x7] sm:$0xff]
        %v1415 = vld [vmem:[%s1413 + $0xf] sm:$0xff]
        %v1416 = vld [vmem:[%s1413 + $0x27] sm:$0xff]
        %v1417 = vld [vmem:[%s1413 + $0x2f] sm:$0xff]
        %v1418 = vld [vmem:[%s1413 + $0x47] sm:$0xff]
        %v1419 = vld [vmem:[%s1413 + $0x4f] sm:$0xff]
        %v1420 = vld [vmem:[%s1413 + $0x67] sm:$0xff]
        %v1421 = vld [vmem:[%s1413 + $0x6f] sm:$0xff]
        %v1422 = vld [vmem:[%s1413 + $0x87] sm:$0xff]
        %v1423 = vld [vmem:[%s1413 + $0x8f] sm:$0xff]
        %v1424 = vld [vmem:[%s1413 + $0xa7] sm:$0xff]
        %v1425 = vld [vmem:[%s1413 + $0xaf] sm:$0xff]
        %v1426 = vld [vmem:[%s1413 + $0xc7] sm:$0xff]
        %v1427 = vld [vmem:[%s1413 + $0xcf] sm:$0xff]
        %v1428 = vld [vmem:[%s1413 + $0xe7] sm:$0xff]
        %v1429 = vld [vmem:[%s1413 + $0xef] sm:$0xff]
        %v1430 = vld [vmem:[%s1413 + $0x107] sm:$0xff]
        %v1431 = vld [vmem:[%s1413 + $0x10f] sm:$0xff]
        %v1432 = vld [vmem:[%s1413 + $0x127] sm:$0xff]
        %v1433 = vld [vmem:[%s1413 + $0x12f] sm:$0xff]
        %v1434 = vld [vmem:[%s1413 + $0x147] sm:$0xff]
        %v1435 = vld [vmem:[%s1413 + $0x14f] sm:$0xff]
        %v1436 = vld [vmem:[%s1413 + $0x167] sm:$0xff]
        %v1437 = vld [vmem:[%s1413 + $0x16f] sm:$0xff]
        %v1438 = vld [vmem:[%s1413 + $0x187] sm:$0xff]
        %v1439 = vld [vmem:[%s1413 + $0x18f] sm:$0xff]
        %v1440 = vld [vmem:[%s1413 + $0x1a7] sm:$0xff]
        %v1441 = vld [vmem:[%s1413 + $0x1af] sm:$0xff]
        %v1442 = vld [vmem:[%s1413 + $0x1c7] sm:$0xff]
        %v1443 = vld [vmem:[%s1413 + $0x1cf] sm:$0xff]
        %v1444 = vld [vmem:[%s1413 + $0x1e7] sm:$0xff]
        %v1445 = vld [vmem:[%s1413 + $0x1ef] sm:$0xff]
        %v1446 = vld [vmem:[%s3 + $0x6] sm:$0x1]
        %v1447 = vlaneseq
        %v1448 = vshrl.u32 %v1447, 7
        %v1449 = vsub.s32 0, %v1448
        %v1450 = vrot.slane %v1446, %v1449
        %v1451 = vmul.f32 %v1414, %v1450
        %v1452 = vmul.f32 %v1415, %v1450
        %v1453 = vmul.f32 %v1416, %v1450
        %v1454 = vmul.f32 %v1417, %v1450
        %v1455 = vmul.f32 %v1418, %v1450
        %v1456 = vmul.f32 %v1419, %v1450
        %v1457 = vmul.f32 %v1420, %v1450
        %v1458 = vmul.f32 %v1421, %v1450
        %v1459 = vmul.f32 %v1422, %v1450
        %v1460 = vmul.f32 %v1423, %v1450
        %v1461 = vmul.f32 %v1424, %v1450
        %v1462 = vmul.f32 %v1425, %v1450
        %v1463 = vmul.f32 %v1426, %v1450
        %v1464 = vmul.f32 %v1427, %v1450
        %v1465 = vmul.f32 %v1428, %v1450
        %v1466 = vmul.f32 %v1429, %v1450
        %v1467 = vmul.f32 %v1430, %v1450
        %v1468 = vmul.f32 %v1431, %v1450
        %v1469 = vmul.f32 %v1432, %v1450
        %v1470 = vmul.f32 %v1433, %v1450
        %v1471 = vmul.f32 %v1434, %v1450
        %v1472 = vmul.f32 %v1435, %v1450
        %v1473 = vmul.f32 %v1436, %v1450
        %v1474 = vmul.f32 %v1437, %v1450
        %v1475 = vmul.f32 %v1438, %v1450
        %v1476 = vmul.f32 %v1439, %v1450
        %v1477 = vmul.f32 %v1440, %v1450
        %v1478 = vmul.f32 %v1441, %v1450
        %v1479 = vmul.f32 %v1442, %v1450
        %v1480 = vmul.f32 %v1443, %v1450
        %v1481 = vmul.f32 %v1444, %v1450
        %v1482 = vmul.f32 %v1445, %v1450
        %v1483 = vadd.f32 %v1381, %v1451
        %v1484 = vadd.f32 %v1382, %v1452
        %v1485 = vadd.f32 %v1383, %v1453
        %v1486 = vadd.f32 %v1384, %v1454
        %v1487 = vadd.f32 %v1385, %v1455
        %v1488 = vadd.f32 %v1386, %v1456
        %v1489 = vadd.f32 %v1387, %v1457
        %v1490 = vadd.f32 %v1388, %v1458
        %v1491 = vadd.f32 %v1389, %v1459
        %v1492 = vadd.f32 %v1390, %v1460
        %v1493 = vadd.f32 %v1391, %v1461
        %v1494 = vadd.f32 %v1392, %v1462
        %v1495 = vadd.f32 %v1393, %v1463
        %v1496 = vadd.f32 %v1394, %v1464
        %v1497 = vadd.f32 %v1395, %v1465
        %v1498 = vadd.f32 %v1396, %v1466
        %v1499 = vadd.f32 %v1397, %v1467
        %v1500 = vadd.f32 %v1398, %v1468
        %v1501 = vadd.f32 %v1399, %v1469
        %v1502 = vadd.f32 %v1400, %v1470
        %v1503 = vadd.f32 %v1401, %v1471
        %v1504 = vadd.f32 %v1402, %v1472
        %v1505 = vadd.f32 %v1403, %v1473
        %v1506 = vadd.f32 %v1404, %v1474
        %v1507 = vadd.f32 %v1405, %v1475
        %v1508 = vadd.f32 %v1406, %v1476
        %v1509 = vadd.f32 %v1407, %v1477
        %v1510 = vadd.f32 %v1408, %v1478
        %v1511 = vadd.f32 %v1409, %v1479
        %v1512 = vadd.f32 %v1410, %v1480
        %v1513 = vadd.f32 %v1411, %v1481
        %v1514 = vadd.f32 %v1412, %v1482
        %v1515 = vld [vmem:[%s1413 + $0x8] sm:$0xff]
        %v1516 = vld [vmem:[%s1413 + $0x10] sm:$0xff]
        %v1517 = vld [vmem:[%s1413 + $0x28] sm:$0xff]
        %v1518 = vld [vmem:[%s1413 + $0x30] sm:$0xff]
        %v1519 = vld [vmem:[%s1413 + $0x48] sm:$0xff]
        %v1520 = vld [vmem:[%s1413 + $0x50] sm:$0xff]
        %v1521 = vld [vmem:[%s1413 + $0x68] sm:$0xff]
        %v1522 = vld [vmem:[%s1413 + $0x70] sm:$0xff]
        %v1523 = vld [vmem:[%s1413 + $0x88] sm:$0xff]
        %v1524 = vld [vmem:[%s1413 + $0x90] sm:$0xff]
        %v1525 = vld [vmem:[%s1413 + $0xa8] sm:$0xff]
        %v1526 = vld [vmem:[%s1413 + $0xb0] sm:$0xff]
        %v1527 = vld [vmem:[%s1413 + $0xc8] sm:$0xff]
        %v1528 = vld [vmem:[%s1413 + $0xd0] sm:$0xff]
        %v1529 = vld [vmem:[%s1413 + $0xe8] sm:$0xff]
        %v1530 = vld [vmem:[%s1413 + $0xf0] sm:$0xff]
        %v1531 = vld [vmem:[%s1413 + $0x108] sm:$0xff]
        %v1532 = vld [vmem:[%s1413 + $0x110] sm:$0xff]
        %v1533 = vld [vmem:[%s1413 + $0x128] sm:$0xff]
        %v1534 = vld [vmem:[%s1413 + $0x130] sm:$0xff]
        %v1535 = vld [vmem:[%s1413 + $0x148] sm:$0xff]
        %v1536 = vld [vmem:[%s1413 + $0x150] sm:$0xff]
        %v1537 = vld [vmem:[%s1413 + $0x168] sm:$0xff]
        %v1538 = vld [vmem:[%s1413 + $0x170] sm:$0xff]
        %v1539 = vld [vmem:[%s1413 + $0x188] sm:$0xff]
        %v1540 = vld [vmem:[%s1413 + $0x190] sm:$0xff]
        %v1541 = vld [vmem:[%s1413 + $0x1a8] sm:$0xff]
        %v1542 = vld [vmem:[%s1413 + $0x1b0] sm:$0xff]
        %v1543 = vld [vmem:[%s1413 + $0x1c8] sm:$0xff]
        %v1544 = vld [vmem:[%s1413 + $0x1d0] sm:$0xff]
        %v1545 = vld [vmem:[%s1413 + $0x1e8] sm:$0xff]
        %v1546 = vld [vmem:[%s1413 + $0x1f0] sm:$0xff]
        %v1547 = vld [vmem:[%s3 + $0x7] sm:$0x1]
        %v1548 = vlaneseq
        %v1549 = vshrl.u32 %v1548, 7
        %v1550 = vsub.s32 0, %v1549
        %v1551 = vrot.slane %v1547, %v1550
        %v1552 = vmul.f32 %v1515, %v1551
        %v1553 = vmul.f32 %v1516, %v1551
        %v1554 = vmul.f32 %v1517, %v1551
        %v1555 = vmul.f32 %v1518, %v1551
        %v1556 = vmul.f32 %v1519, %v1551
        %v1557 = vmul.f32 %v1520, %v1551
        %v1558 = vmul.f32 %v1521, %v1551
        %v1559 = vmul.f32 %v1522, %v1551
        %v1560 = vmul.f32 %v1523, %v1551
        %v1561 = vmul.f32 %v1524, %v1551
        %v1562 = vmul.f32 %v1525, %v1551
        %v1563 = vmul.f32 %v1526, %v1551
        %v1564 = vmul.f32 %v1527, %v1551
        %v1565 = vmul.f32 %v1528, %v1551
        %v1566 = vmul.f32 %v1529, %v1551
        %v1567 = vmul.f32 %v1530, %v1551
        %v1568 = vmul.f32 %v1531, %v1551
        %v1569 = vmul.f32 %v1532, %v1551
        %v1570 = vmul.f32 %v1533, %v1551
        %v1571 = vmul.f32 %v1534, %v1551
        %v1572 = vmul.f32 %v1535, %v1551
        %v1573 = vmul.f32 %v1536, %v1551
        %v1574 = vmul.f32 %v1537, %v1551
        %v1575 = vmul.f32 %v1538, %v1551
        %v1576 = vmul.f32 %v1539, %v1551
        %v1577 = vmul.f32 %v1540, %v1551
        %v1578 = vmul.f32 %v1541, %v1551
        %v1579 = vmul.f32 %v1542, %v1551
        %v1580 = vmul.f32 %v1543, %v1551
        %v1581 = vmul.f32 %v1544, %v1551
        %v1582 = vmul.f32 %v1545, %v1551
        %v1583 = vmul.f32 %v1546, %v1551
        %v1584 = vadd.f32 %v1483, %v1552
        %v1585 = vadd.f32 %v1484, %v1553
        %v1586 = vadd.f32 %v1485, %v1554
        %v1587 = vadd.f32 %v1486, %v1555
        %v1588 = vadd.f32 %v1487, %v1556
        %v1589 = vadd.f32 %v1488, %v1557
        %v1590 = vadd.f32 %v1489, %v1558
        %v1591 = vadd.f32 %v1490, %v1559
        %v1592 = vadd.f32 %v1491, %v1560
        %v1593 = vadd.f32 %v1492, %v1561
        %v1594 = vadd.f32 %v1493, %v1562
        %v1595 = vadd.f32 %v1494, %v1563
        %v1596 = vadd.f32 %v1495, %v1564
        %v1597 = vadd.f32 %v1496, %v1565
        %v1598 = vadd.f32 %v1497, %v1566
        %v1599 = vadd.f32 %v1498, %v1567
        %v1600 = vadd.f32 %v1499, %v1568
        %v1601 = vadd.f32 %v1500, %v1569
        %v1602 = vadd.f32 %v1501, %v1570
        %v1603 = vadd.f32 %v1502, %v1571
        %v1604 = vadd.f32 %v1503, %v1572
        %v1605 = vadd.f32 %v1504, %v1573
        %v1606 = vadd.f32 %v1505, %v1574
        %v1607 = vadd.f32 %v1506, %v1575
        %v1608 = vadd.f32 %v1507, %v1576
        %v1609 = vadd.f32 %v1508, %v1577
        %v1610 = vadd.f32 %v1509, %v1578
        %v1611 = vadd.f32 %v1510, %v1579
        %v1612 = vadd.f32 %v1511, %v1580
        %v1613 = vadd.f32 %v1512, %v1581
        %v1614 = vadd.f32 %v1513, %v1582
        %v1615 = vadd.f32 %v1514, %v1583
        %v1616 = vld [vmem:[%s1413 + $0x9] sm:$0xff]
        %v1617 = vld [vmem:[%s1413 + $0x11] sm:$0xff]
        %v1618 = vld [vmem:[%s1413 + $0x29] sm:$0xff]
        %v1619 = vld [vmem:[%s1413 + $0x31] sm:$0xff]
        %v1620 = vld [vmem:[%s1413 + $0x49] sm:$0xff]
        %v1621 = vld [vmem:[%s1413 + $0x51] sm:$0xff]
        %v1622 = vld [vmem:[%s1413 + $0x69] sm:$0xff]
        %v1623 = vld [vmem:[%s1413 + $0x71] sm:$0xff]
        %v1624 = vld [vmem:[%s1413 + $0x89] sm:$0xff]
        %v1625 = vld [vmem:[%s1413 + $0x91] sm:$0xff]
        %v1626 = vld [vmem:[%s1413 + $0xa9] sm:$0xff]
        %v1627 = vld [vmem:[%s1413 + $0xb1] sm:$0xff]
        %v1628 = vld [vmem:[%s1413 + $0xc9] sm:$0xff]
        %v1629 = vld [vmem:[%s1413 + $0xd1] sm:$0xff]
        %v1630 = vld [vmem:[%s1413 + $0xe9] sm:$0xff]
        %v1631 = vld [vmem:[%s1413 + $0xf1] sm:$0xff]
        %v1632 = vld [vmem:[%s1413 + $0x109] sm:$0xff]
        %v1633 = vld [vmem:[%s1413 + $0x111] sm:$0xff]
        %v1634 = vld [vmem:[%s1413 + $0x129] sm:$0xff]
        %v1635 = vld [vmem:[%s1413 + $0x131] sm:$0xff]
        %v1636 = vld [vmem:[%s1413 + $0x149] sm:$0xff]
        %v1637 = vld [vmem:[%s1413 + $0x151] sm:$0xff]
        %v1638 = vld [vmem:[%s1413 + $0x169] sm:$0xff]
        %v1639 = vld [vmem:[%s1413 + $0x171] sm:$0xff]
        %v1640 = vld [vmem:[%s1413 + $0x189] sm:$0xff]
        %v1641 = vld [vmem:[%s1413 + $0x191] sm:$0xff]
        %v1642 = vld [vmem:[%s1413 + $0x1a9] sm:$0xff]
        %v1643 = vld [vmem:[%s1413 + $0x1b1] sm:$0xff]
        %v1644 = vld [vmem:[%s1413 + $0x1c9] sm:$0xff]
        %v1645 = vld [vmem:[%s1413 + $0x1d1] sm:$0xff]
        %v1646 = vld [vmem:[%s1413 + $0x1e9] sm:$0xff]
        %v1647 = vld [vmem:[%s1413 + $0x1f1] sm:$0xff]
        %v1648 = vld [vmem:[%s3 + $0x8] sm:$0x1]
        %v1649 = vlaneseq
        %v1650 = vshrl.u32 %v1649, 7
        %v1651 = vsub.s32 0, %v1650
        %v1652 = vrot.slane %v1648, %v1651
        %v1653 = vmul.f32 %v1616, %v1652
        %v1654 = vmul.f32 %v1617, %v1652
        %v1655 = vmul.f32 %v1618, %v1652
        %v1656 = vmul.f32 %v1619, %v1652
        %v1657 = vmul.f32 %v1620, %v1652
        %v1658 = vmul.f32 %v1621, %v1652
        %v1659 = vmul.f32 %v1622, %v1652
        %v1660 = vmul.f32 %v1623, %v1652
        %v1661 = vmul.f32 %v1624, %v1652
        %v1662 = vmul.f32 %v1625, %v1652
        %v1663 = vmul.f32 %v1626, %v1652
        %v1664 = vmul.f32 %v1627, %v1652
        %v1665 = vmul.f32 %v1628, %v1652
        %v1666 = vmul.f32 %v1629, %v1652
        %v1667 = vmul.f32 %v1630, %v1652
        %v1668 = vmul.f32 %v1631, %v1652
        %v1669 = vmul.f32 %v1632, %v1652
        %v1670 = vmul.f32 %v1633, %v1652
        %v1671 = vmul.f32 %v1634, %v1652
        %v1672 = vmul.f32 %v1635, %v1652
        %v1673 = vmul.f32 %v1636, %v1652
        %v1674 = vmul.f32 %v1637, %v1652
        %v1675 = vmul.f32 %v1638, %v1652
        %v1676 = vmul.f32 %v1639, %v1652
        %v1677 = vmul.f32 %v1640, %v1652
        %v1678 = vmul.f32 %v1641, %v1652
        %v1679 = vmul.f32 %v1642, %v1652
        %v1680 = vmul.f32 %v1643, %v1652
        %v1681 = vmul.f32 %v1644, %v1652
        %v1682 = vmul.f32 %v1645, %v1652
        %v1683 = vmul.f32 %v1646, %v1652
        %v1684 = vmul.f32 %v1647, %v1652
        %v1685 = vadd.f32 %v1584, %v1653
        %v1686 = vadd.f32 %v1585, %v1654
        %v1687 = vadd.f32 %v1586, %v1655
        %v1688 = vadd.f32 %v1587, %v1656
        %v1689 = vadd.f32 %v1588, %v1657
        %v1690 = vadd.f32 %v1589, %v1658
        %v1691 = vadd.f32 %v1590, %v1659
        %v1692 = vadd.f32 %v1591, %v1660
        %v1693 = vadd.f32 %v1592, %v1661
        %v1694 = vadd.f32 %v1593, %v1662
        %v1695 = vadd.f32 %v1594, %v1663
        %v1696 = vadd.f32 %v1595, %v1664
        %v1697 = vadd.f32 %v1596, %v1665
        %v1698 = vadd.f32 %v1597, %v1666
        %v1699 = vadd.f32 %v1598, %v1667
        %v1700 = vadd.f32 %v1599, %v1668
        %v1701 = vadd.f32 %v1600, %v1669
        %v1702 = vadd.f32 %v1601, %v1670
        %v1703 = vadd.f32 %v1602, %v1671
        %v1704 = vadd.f32 %v1603, %v1672
        %v1705 = vadd.f32 %v1604, %v1673
        %v1706 = vadd.f32 %v1605, %v1674
        %v1707 = vadd.f32 %v1606, %v1675
        %v1708 = vadd.f32 %v1607, %v1676
        %v1709 = vadd.f32 %v1608, %v1677
        %v1710 = vadd.f32 %v1609, %v1678
        %v1711 = vadd.f32 %v1610, %v1679
        %v1712 = vadd.f32 %v1611, %v1680
        %v1713 = vadd.f32 %v1612, %v1681
        %v1714 = vadd.f32 %v1613, %v1682
        %v1715 = vadd.f32 %v1614, %v1683
        %v1716 = vadd.f32 %v1615, %v1684
        %v1717 = vld [vmem:[%s4] sm:$0x1]
        %v1719 = vlaneseq
        %v1720 = vshrl.u32 %v1719, 7
        %v1721 = vsub.s32 0, %v1720
        %v1722 = vrot.slane %v1717, %v1721
        %v1724 = vadd.f32 %v1685, %v1722
        %v1725 = vadd.f32 %v1686, %v1722
        %v1726 = vadd.f32 %v1687, %v1722
        %v1727 = vadd.f32 %v1688, %v1722
        %v1728 = vadd.f32 %v1689, %v1722
        %v1729 = vadd.f32 %v1690, %v1722
        %v1730 = vadd.f32 %v1691, %v1722
        %v1731 = vadd.f32 %v1692, %v1722
        %v1732 = vadd.f32 %v1693, %v1722
        %v1733 = vadd.f32 %v1694, %v1722
        %v1734 = vadd.f32 %v1695, %v1722
        %v1735 = vadd.f32 %v1696, %v1722
        %v1736 = vadd.f32 %v1697, %v1722
        %v1737 = vadd.f32 %v1698, %v1722
        %v1738 = vadd.f32 %v1699, %v1722
        %v1739 = vadd.f32 %v1700, %v1722
        %v1740 = vadd.f32 %v1701, %v1722
        %v1741 = vadd.f32 %v1702, %v1722
        %v1742 = vadd.f32 %v1703, %v1722
        %v1743 = vadd.f32 %v1704, %v1722
        %v1744 = vadd.f32 %v1705, %v1722
        %v1745 = vadd.f32 %v1706, %v1722
        %v1746 = vadd.f32 %v1707, %v1722
        %v1747 = vadd.f32 %v1708, %v1722
        %v1748 = vadd.f32 %v1709, %v1722
        %v1749 = vadd.f32 %v1710, %v1722
        %v1750 = vadd.f32 %v1711, %v1722
        %v1751 = vadd.f32 %v1712, %v1722
        %v1752 = vadd.f32 %v1713, %v1722
        %v1753 = vadd.f32 %v1714, %v1722
        %v1754 = vadd.f32 %v1715, %v1722
        %v1755 = vadd.f32 %v1716, %v1722
        %v1756 = vmul.f32 %v1724, 0.5
        %v1757 = vmul.f32 %v1725, 0.5
        %v1758 = vmul.f32 %v1726, 0.5
        %v1759 = vmul.f32 %v1727, 0.5
        %v1760 = vmul.f32 %v1728, 0.5
        %v1761 = vmul.f32 %v1729, 0.5
        %v1762 = vmul.f32 %v1730, 0.5
        %v1763 = vmul.f32 %v1731, 0.5
        %v1764 = vmul.f32 %v1732, 0.5
        %v1765 = vmul.f32 %v1733, 0.5
        %v1766 = vmul.f32 %v1734, 0.5
        %v1767 = vmul.f32 %v1735, 0.5
        %v1768 = vmul.f32 %v1736, 0.5
        %v1769 = vmul.f32 %v1737, 0.5
        %v1770 = vmul.f32 %v1738, 0.5
        %v1771 = vmul.f32 %v1739, 0.5
        %v1772 = vmul.f32 %v1740, 0.5
        %v1773 = vmul.f32 %v1741, 0.5
        %v1774 = vmul.f32 %v1742, 0.5
        %v1775 = vmul.f32 %v1743, 0.5
        %v1776 = vmul.f32 %v1744, 0.5
        %v1777 = vmul.f32 %v1745, 0.5
        %v1778 = vmul.f32 %v1746, 0.5
        %v1779 = vmul.f32 %v1747, 0.5
        %v1780 = vmul.f32 %v1748, 0.5
        %v1781 = vmul.f32 %v1749, 0.5
        %v1782 = vmul.f32 %v1750, 0.5
        %v1783 = vmul.f32 %v1751, 0.5
        %v1784 = vmul.f32 %v1752, 0.5
        %v1785 = vmul.f32 %v1753, 0.5
        %v1786 = vmul.f32 %v1754, 0.5
        %v1787 = vmul.f32 %v1755, 0.5
        %v1788 = vtanh.pop %v1756
        %v1789 = vtanh.pop %v1757
        %v1790 = vtanh.pop %v1758
        %v1791 = vtanh.pop %v1759
        %v1792 = vtanh.pop %v1760
        %v1793 = vtanh.pop %v1761
        %v1794 = vtanh.pop %v1762
        %v1795 = vtanh.pop %v1763
        %v1796 = vtanh.pop %v1764
        %v1797 = vtanh.pop %v1765
        %v1798 = vtanh.pop %v1766
        %v1799 = vtanh.pop %v1767
        %v1800 = vtanh.pop %v1768
        %v1801 = vtanh.pop %v1769
        %v1802 = vtanh.pop %v1770
        %v1803 = vtanh.pop %v1771
        %v1804 = vtanh.pop %v1772
        %v1805 = vtanh.pop %v1773
        %v1806 = vtanh.pop %v1774
        %v1807 = vtanh.pop %v1775
        %v1808 = vtanh.pop %v1776
        %v1809 = vtanh.pop %v1777
        %v1810 = vtanh.pop %v1778
        %v1811 = vtanh.pop %v1779
        %v1812 = vtanh.pop %v1780
        %v1813 = vtanh.pop %v1781
        %v1814 = vtanh.pop %v1782
        %v1815 = vtanh.pop %v1783
        %v1816 = vtanh.pop %v1784
        %v1817 = vtanh.pop %v1785
        %v1818 = vtanh.pop %v1786
        %v1819 = vtanh.pop %v1787
        %v1820 = vadd.f32 %v1788, 1.0
        %v1821 = vadd.f32 %v1789, 1.0
        %v1822 = vadd.f32 %v1790, 1.0
        %v1823 = vadd.f32 %v1791, 1.0
        %v1824 = vadd.f32 %v1792, 1.0
        %v1825 = vadd.f32 %v1793, 1.0
        %v1826 = vadd.f32 %v1794, 1.0
        %v1827 = vadd.f32 %v1795, 1.0
        %v1828 = vadd.f32 %v1796, 1.0
        %v1829 = vadd.f32 %v1797, 1.0
        %v1830 = vadd.f32 %v1798, 1.0
        %v1831 = vadd.f32 %v1799, 1.0
        %v1832 = vadd.f32 %v1800, 1.0
        %v1833 = vadd.f32 %v1801, 1.0
        %v1834 = vadd.f32 %v1802, 1.0
        %v1835 = vadd.f32 %v1803, 1.0
        %v1836 = vadd.f32 %v1804, 1.0
        %v1837 = vadd.f32 %v1805, 1.0
        %v1838 = vadd.f32 %v1806, 1.0
        %v1839 = vadd.f32 %v1807, 1.0
        %v1840 = vadd.f32 %v1808, 1.0
        %v1841 = vadd.f32 %v1809, 1.0
        %v1842 = vadd.f32 %v1810, 1.0
        %v1843 = vadd.f32 %v1811, 1.0
        %v1844 = vadd.f32 %v1812, 1.0
        %v1845 = vadd.f32 %v1813, 1.0
        %v1846 = vadd.f32 %v1814, 1.0
        %v1847 = vadd.f32 %v1815, 1.0
        %v1848 = vadd.f32 %v1816, 1.0
        %v1849 = vadd.f32 %v1817, 1.0
        %v1850 = vadd.f32 %v1818, 1.0
        %v1851 = vadd.f32 %v1819, 1.0
        %v1852 = vmul.f32 %v1756, %v1820
        %v1853 = vmul.f32 %v1757, %v1821
        %v1854 = vmul.f32 %v1758, %v1822
        %v1855 = vmul.f32 %v1759, %v1823
        %v1856 = vmul.f32 %v1760, %v1824
        %v1857 = vmul.f32 %v1761, %v1825
        %v1858 = vmul.f32 %v1762, %v1826
        %v1859 = vmul.f32 %v1763, %v1827
        %v1860 = vmul.f32 %v1764, %v1828
        %v1861 = vmul.f32 %v1765, %v1829
        %v1862 = vmul.f32 %v1766, %v1830
        %v1863 = vmul.f32 %v1767, %v1831
        %v1864 = vmul.f32 %v1768, %v1832
        %v1865 = vmul.f32 %v1769, %v1833
        %v1866 = vmul.f32 %v1770, %v1834
        %v1867 = vmul.f32 %v1771, %v1835
        %v1868 = vmul.f32 %v1772, %v1836
        %v1869 = vmul.f32 %v1773, %v1837
        %v1870 = vmul.f32 %v1774, %v1838
        %v1871 = vmul.f32 %v1775, %v1839
        %v1872 = vmul.f32 %v1776, %v1840
        %v1873 = vmul.f32 %v1777, %v1841
        %v1874 = vmul.f32 %v1778, %v1842
        %v1875 = vmul.f32 %v1779, %v1843
        %v1876 = vmul.f32 %v1780, %v1844
        %v1877 = vmul.f32 %v1781, %v1845
        %v1878 = vmul.f32 %v1782, %v1846
        %v1879 = vmul.f32 %v1783, %v1847
        %v1880 = vmul.f32 %v1784, %v1848
        %v1881 = vmul.f32 %v1785, %v1849
        %v1882 = vmul.f32 %v1786, %v1850
        %v1883 = vmul.f32 %v1787, %v1851
        %v1884 = vpack.c.bf16 %v1853, %v1852
        %v1885 = vpack.c.bf16 %v1855, %v1854
        %v1886 = vpack.c.bf16 %v1857, %v1856
        %v1887 = vpack.c.bf16 %v1859, %v1858
        %v1888 = vpack.c.bf16 %v1861, %v1860
        %v1889 = vpack.c.bf16 %v1863, %v1862
        %v1890 = vpack.c.bf16 %v1865, %v1864
        %v1891 = vpack.c.bf16 %v1867, %v1866
        %v1892 = vpack.c.bf16 %v1869, %v1868
        %v1893 = vpack.c.bf16 %v1871, %v1870
        %v1894 = vpack.c.bf16 %v1873, %v1872
        %v1895 = vpack.c.bf16 %v1875, %v1874
        %v1896 = vpack.c.bf16 %v1877, %v1876
        %v1897 = vpack.c.bf16 %v1879, %v1878
        %v1898 = vpack.c.bf16 %v1881, %v1880
        %v1899 = vpack.c.bf16 %v1883, %v1882
        %v1900 = vld [vmem:[%s5] sm:$0xf]
        %v1902 = vsel %vm731, %v1884, 0
        %v1905 = vsel %vm731, %v1885, 0
        %v1908 = vsel %vm731, %v1886, 0
        %v1911 = vsel %vm731, %v1887, 0
        %v1914 = vsel %vm731, %v1888, 0
        %v1917 = vsel %vm731, %v1889, 0
        %v1920 = vsel %vm731, %v1890, 0
        %v1923 = vsel %vm731, %v1891, 0
        %v1926 = vsel %vm731, %v1892, 0
        %v1929 = vsel %vm731, %v1893, 0
        %v1932 = vsel %vm731, %v1894, 0
        %v1935 = vsel %vm731, %v1895, 0
        %v1938 = vsel %vm731, %v1896, 0
        %v1941 = vsel %vm731, %v1897, 0
        %v1944 = vsel %vm731, %v1898, 0
        %v1947 = vsel %vm731, %v1899, 0
        %vm1949 = vcmask 1043456
        %v1951 = vsel %vm1949, %v1900, 0
        %1953 = vmatprep.subr.bf16.mxu0 0
        %1954 = vmatpush1.bf16.msra.mxu0 0
        %1955 = vmatprep.subr.bf16.mxu0 0
        %1956 = vmatpush1.bf16.msra.mxu0 0
        %1957 = vmatprep.subr.bf16.mxu0 0
        %1958 = vmatpush1.bf16.msra.mxu0 0
        %1959 = vmatprep.subr.bf16.mxu0 0
        %1960 = vmatpush1.bf16.msra.mxu0 0
        %1961 = vmatprep.subr.bf16.mxu0 0
        %1962 = vmatpush1.bf16.msra.mxu0 0
        %1963 = vmatprep.subr.bf16.mxu0 0
        %1964 = vmatpush1.bf16.msra.mxu0 0
        %1965 = vmatprep.subr.bf16.mxu0 0
        %1966 = vmatpush1.bf16.msra.mxu0 0
        %1967 = vmatprep.subr.bf16.mxu0 0
        %1968 = vmatpush1.bf16.msra.mxu0 %v1951
        %1969 = vmatprep.subr.bf16.mxu0 0
        %1970 = vmatpush2.bf16.msra.mxu0 0
        %1971 = vmatprep.subr.bf16.mxu0 0
        %1972 = vmatpush2.bf16.msra.mxu0 0
        %1973 = vmatprep.subr.bf16.mxu0 0
        %1974 = vmatpush2.bf16.msra.mxu0 0
        %1975 = vmatprep.subr.bf16.mxu0 0
        %1976 = vmatpush2.bf16.msra.mxu0 0
        %1977 = vmatprep.subr.bf16.mxu0 0
        %1978 = vmatpush2.bf16.msra.mxu0 0
        %1979 = vmatprep.subr.bf16.mxu0 0
        %1980 = vmatpush2.bf16.msra.mxu0 0
        %1981 = vmatprep.subr.bf16.mxu0 0
        %1982 = vmatpush2.bf16.msra.mxu0 0
        %1983 = vmatprep.subr.bf16.mxu0 0
        %1984 = vmatpush2.bf16.msra.mxu0 0
        %1985 = vmatprep.mubr.bf16.mxu0 0
        %1986 = vmatmul.mubr.bf16.gmra.mxu0 %v1902
        %v1987 = vpop.f32.mrf.mxu0
        %v1988 = vadd.f32 0.0, %v1987
        %v1989 = vpop.f32.mrf.mxu0
        %v1990 = vpop.f32.mrf.mxu0
        %v1991 = vadd.f32 0.0, %v1990
        %v1992 = vpop.f32.mrf.mxu0
        %1993 = vmatprep.mubr.bf16.mxu0 0
        %1994 = vmatmul.mubr.bf16.gmra.mxu0 %v1905
        %v1995 = vpop.f32.mrf.mxu0
        %v1996 = vadd.f32 0.0, %v1995
        %v1997 = vpop.f32.mrf.mxu0
        %v1998 = vpop.f32.mrf.mxu0
        %v1999 = vadd.f32 0.0, %v1998
        %v2000 = vpop.f32.mrf.mxu0
        %2001 = vmatprep.mubr.bf16.mxu0 0
        %2002 = vmatmul.mubr.bf16.gmra.mxu0 %v1908
        %v2003 = vpop.f32.mrf.mxu0
        %v2004 = vadd.f32 0.0, %v2003
        %v2005 = vpop.f32.mrf.mxu0
        %v2006 = vpop.f32.mrf.mxu0
        %v2007 = vadd.f32 0.0, %v2006
        %v2008 = vpop.f32.mrf.mxu0
        %2009 = vmatprep.mubr.bf16.mxu0 0
        %2010 = vmatmul.mubr.bf16.gmra.mxu0 %v1911
        %v2011 = vpop.f32.mrf.mxu0
        %v2012 = vadd.f32 0.0, %v2011
        %v2013 = vpop.f32.mrf.mxu0
        %v2014 = vpop.f32.mrf.mxu0
        %v2015 = vadd.f32 0.0, %v2014
        %v2016 = vpop.f32.mrf.mxu0
        %2017 = vmatprep.mubr.bf16.mxu0 0
        %2018 = vmatmul.mubr.bf16.gmra.mxu0 %v1914
        %v2019 = vpop.f32.mrf.mxu0
        %v2020 = vadd.f32 0.0, %v2019
        %v2021 = vpop.f32.mrf.mxu0
        %v2022 = vpop.f32.mrf.mxu0
        %v2023 = vadd.f32 0.0, %v2022
        %v2024 = vpop.f32.mrf.mxu0
        %2025 = vmatprep.mubr.bf16.mxu0 0
        %2026 = vmatmul.mubr.bf16.gmra.mxu0 %v1917
        %v2027 = vpop.f32.mrf.mxu0
        %v2028 = vadd.f32 0.0, %v2027
        %v2029 = vpop.f32.mrf.mxu0
        %v2030 = vpop.f32.mrf.mxu0
        %v2031 = vadd.f32 0.0, %v2030
        %v2032 = vpop.f32.mrf.mxu0
        %2033 = vmatprep.mubr.bf16.mxu0 0
        %2034 = vmatmul.mubr.bf16.gmra.mxu0 %v1920
        %v2035 = vpop.f32.mrf.mxu0
        %v2036 = vadd.f32 0.0, %v2035
        %v2037 = vpop.f32.mrf.mxu0
        %v2038 = vpop.f32.mrf.mxu0
        %v2039 = vadd.f32 0.0, %v2038
        %v2040 = vpop.f32.mrf.mxu0
        %2041 = vmatprep.mubr.bf16.mxu0 0
        %2042 = vmatmul.mubr.bf16.gmra.mxu0 %v1923
        %v2043 = vpop.f32.mrf.mxu0
        %v2044 = vadd.f32 0.0, %v2043
        %v2045 = vpop.f32.mrf.mxu0
        %v2046 = vpop.f32.mrf.mxu0
        %v2047 = vadd.f32 0.0, %v2046
        %v2048 = vpop.f32.mrf.mxu0
        %2049 = vmatprep.mubr.bf16.mxu0 0
        %2050 = vmatmul.mubr.bf16.gmra.mxu0 %v1926
        %v2051 = vpop.f32.mrf.mxu0
        %v2052 = vadd.f32 0.0, %v2051
        %v2053 = vpop.f32.mrf.mxu0
        %v2054 = vpop.f32.mrf.mxu0
        %v2055 = vadd.f32 0.0, %v2054
        %v2056 = vpop.f32.mrf.mxu0
        %2057 = vmatprep.mubr.bf16.mxu0 0
        %2058 = vmatmul.mubr.bf16.gmra.mxu0 %v1929
        %v2059 = vpop.f32.mrf.mxu0
        %v2060 = vadd.f32 0.0, %v2059
        %v2061 = vpop.f32.mrf.mxu0
        %v2062 = vpop.f32.mrf.mxu0
        %v2063 = vadd.f32 0.0, %v2062
        %v2064 = vpop.f32.mrf.mxu0
        %2065 = vmatprep.mubr.bf16.mxu0 0
        %2066 = vmatmul.mubr.bf16.gmra.mxu0 %v1932
        %v2067 = vpop.f32.mrf.mxu0
        %v2068 = vadd.f32 0.0, %v2067
        %v2069 = vpop.f32.mrf.mxu0
        %v2070 = vpop.f32.mrf.mxu0
        %v2071 = vadd.f32 0.0, %v2070
        %v2072 = vpop.f32.mrf.mxu0
        %2073 = vmatprep.mubr.bf16.mxu0 0
        %2074 = vmatmul.mubr.bf16.gmra.mxu0 %v1935
        %v2075 = vpop.f32.mrf.mxu0
        %v2076 = vadd.f32 0.0, %v2075
        %v2077 = vpop.f32.mrf.mxu0
        %v2078 = vpop.f32.mrf.mxu0
        %v2079 = vadd.f32 0.0, %v2078
        %v2080 = vpop.f32.mrf.mxu0
        %2081 = vmatprep.mubr.bf16.mxu0 0
        %2082 = vmatmul.mubr.bf16.gmra.mxu0 %v1938
        %v2083 = vpop.f32.mrf.mxu0
        %v2084 = vadd.f32 0.0, %v2083
        %v2085 = vpop.f32.mrf.mxu0
        %v2086 = vpop.f32.mrf.mxu0
        %v2087 = vadd.f32 0.0, %v2086
        %v2088 = vpop.f32.mrf.mxu0
        %2089 = vmatprep.mubr.bf16.mxu0 0
        %2090 = vmatmul.mubr.bf16.gmra.mxu0 %v1941
        %v2091 = vpop.f32.mrf.mxu0
        %v2092 = vadd.f32 0.0, %v2091
        %v2093 = vpop.f32.mrf.mxu0
        %v2094 = vpop.f32.mrf.mxu0
        %v2095 = vadd.f32 0.0, %v2094
        %v2096 = vpop.f32.mrf.mxu0
        %2097 = vmatprep.mubr.bf16.mxu0 0
        %2098 = vmatmul.mubr.bf16.gmra.mxu0 %v1944
        %v2099 = vpop.f32.mrf.mxu0
        %v2100 = vadd.f32 0.0, %v2099
        %v2101 = vpop.f32.mrf.mxu0
        %v2102 = vpop.f32.mrf.mxu0
        %v2103 = vadd.f32 0.0, %v2102
        %v2104 = vpop.f32.mrf.mxu0
        %2105 = vmatprep.mubr.bf16.mxu0 0
        %2106 = vmatmul.mubr.bf16.gmra.mxu0 %v1947
        %v2107 = vpop.f32.mrf.mxu0
        %v2108 = vadd.f32 0.0, %v2107
        %v2109 = vpop.f32.mrf.mxu0
        %v2110 = vpop.f32.mrf.mxu0
        %v2111 = vadd.f32 0.0, %v2110
        %v2112 = vpop.f32.mrf.mxu0
        %2113 = vdwg.mxu0
        %v2114 = vld [vmem:[%s6] sm:$0x1]
        %v2116 = vlaneseq
        %v2117 = vshrl.u32 %v2116, 7
        %v2118 = vsub.s32 0, %v2117
        %v2119 = vrot.slane %v2114, %v2118
        %v2121 = vadd.f32 %v1988, %v2119
        %v2122 = vadd.f32 %v1991, %v2119
        %v2123 = vadd.f32 %v1996, %v2119
        %v2124 = vadd.f32 %v1999, %v2119
        %v2125 = vadd.f32 %v2004, %v2119
        %v2126 = vadd.f32 %v2007, %v2119
        %v2127 = vadd.f32 %v2012, %v2119
        %v2128 = vadd.f32 %v2015, %v2119
        %v2129 = vadd.f32 %v2020, %v2119
        %v2130 = vadd.f32 %v2023, %v2119
        %v2131 = vadd.f32 %v2028, %v2119
        %v2132 = vadd.f32 %v2031, %v2119
        %v2133 = vadd.f32 %v2036, %v2119
        %v2134 = vadd.f32 %v2039, %v2119
        %v2135 = vadd.f32 %v2044, %v2119
        %v2136 = vadd.f32 %v2047, %v2119
        %v2137 = vadd.f32 %v2052, %v2119
        %v2138 = vadd.f32 %v2055, %v2119
        %v2139 = vadd.f32 %v2060, %v2119
        %v2140 = vadd.f32 %v2063, %v2119
        %v2141 = vadd.f32 %v2068, %v2119
        %v2142 = vadd.f32 %v2071, %v2119
        %v2143 = vadd.f32 %v2076, %v2119
        %v2144 = vadd.f32 %v2079, %v2119
        %v2145 = vadd.f32 %v2084, %v2119
        %v2146 = vadd.f32 %v2087, %v2119
        %v2147 = vadd.f32 %v2092, %v2119
        %v2148 = vadd.f32 %v2095, %v2119
        %v2149 = vadd.f32 %v2100, %v2119
        %v2150 = vadd.f32 %v2103, %v2119
        %v2151 = vadd.f32 %v2108, %v2119
        %v2152 = vadd.f32 %v2111, %v2119
        %v2153 = vmul.f32 %v2121, 0.5
        %v2154 = vmul.f32 %v2122, 0.5
        %v2155 = vmul.f32 %v2123, 0.5
        %v2156 = vmul.f32 %v2124, 0.5
        %v2157 = vmul.f32 %v2125, 0.5
        %v2158 = vmul.f32 %v2126, 0.5
        %v2159 = vmul.f32 %v2127, 0.5
        %v2160 = vmul.f32 %v2128, 0.5
        %v2161 = vmul.f32 %v2129, 0.5
        %v2162 = vmul.f32 %v2130, 0.5
        %v2163 = vmul.f32 %v2131, 0.5
        %v2164 = vmul.f32 %v2132, 0.5
        %v2165 = vmul.f32 %v2133, 0.5
        %v2166 = vmul.f32 %v2134, 0.5
        %v2167 = vmul.f32 %v2135, 0.5
        %v2168 = vmul.f32 %v2136, 0.5
        %v2169 = vmul.f32 %v2137, 0.5
        %v2170 = vmul.f32 %v2138, 0.5
        %v2171 = vmul.f32 %v2139, 0.5
        %v2172 = vmul.f32 %v2140, 0.5
        %v2173 = vmul.f32 %v2141, 0.5
        %v2174 = vmul.f32 %v2142, 0.5
        %v2175 = vmul.f32 %v2143, 0.5
        %v2176 = vmul.f32 %v2144, 0.5
        %v2177 = vmul.f32 %v2145, 0.5
        %v2178 = vmul.f32 %v2146, 0.5
        %v2179 = vmul.f32 %v2147, 0.5
        %v2180 = vmul.f32 %v2148, 0.5
        %v2181 = vmul.f32 %v2149, 0.5
        %v2182 = vmul.f32 %v2150, 0.5
        %v2183 = vmul.f32 %v2151, 0.5
        %v2184 = vmul.f32 %v2152, 0.5
        %v2185 = vtanh.pop %v2153
        %v2186 = vtanh.pop %v2154
        %v2187 = vtanh.pop %v2155
        %v2188 = vtanh.pop %v2156
        %v2189 = vtanh.pop %v2157
        %v2190 = vtanh.pop %v2158
        %v2191 = vtanh.pop %v2159
        %v2192 = vtanh.pop %v2160
        %v2193 = vtanh.pop %v2161
        %v2194 = vtanh.pop %v2162
        %v2195 = vtanh.pop %v2163
        %v2196 = vtanh.pop %v2164
        %v2197 = vtanh.pop %v2165
        %v2198 = vtanh.pop %v2166
        %v2199 = vtanh.pop %v2167
        %v2200 = vtanh.pop %v2168
        %v2201 = vtanh.pop %v2169
        %v2202 = vtanh.pop %v2170
        %v2203 = vtanh.pop %v2171
        %v2204 = vtanh.pop %v2172
        %v2205 = vtanh.pop %v2173
        %v2206 = vtanh.pop %v2174
        %v2207 = vtanh.pop %v2175
        %v2208 = vtanh.pop %v2176
        %v2209 = vtanh.pop %v2177
        %v2210 = vtanh.pop %v2178
        %v2211 = vtanh.pop %v2179
        %v2212 = vtanh.pop %v2180
        %v2213 = vtanh.pop %v2181
        %v2214 = vtanh.pop %v2182
        %v2215 = vtanh.pop %v2183
        %v2216 = vtanh.pop %v2184
        %v2217 = vadd.f32 %v2185, 1.0
        %v2218 = vadd.f32 %v2186, 1.0
        %v2219 = vadd.f32 %v2187, 1.0
        %v2220 = vadd.f32 %v2188, 1.0
        %v2221 = vadd.f32 %v2189, 1.0
        %v2222 = vadd.f32 %v2190, 1.0
        %v2223 = vadd.f32 %v2191, 1.0
        %v2224 = vadd.f32 %v2192, 1.0
        %v2225 = vadd.f32 %v2193, 1.0
        %v2226 = vadd.f32 %v2194, 1.0
        %v2227 = vadd.f32 %v2195, 1.0
        %v2228 = vadd.f32 %v2196, 1.0
        %v2229 = vadd.f32 %v2197, 1.0
        %v2230 = vadd.f32 %v2198, 1.0
        %v2231 = vadd.f32 %v2199, 1.0
        %v2232 = vadd.f32 %v2200, 1.0
        %v2233 = vadd.f32 %v2201, 1.0
        %v2234 = vadd.f32 %v2202, 1.0
        %v2235 = vadd.f32 %v2203, 1.0
        %v2236 = vadd.f32 %v2204, 1.0
        %v2237 = vadd.f32 %v2205, 1.0
        %v2238 = vadd.f32 %v2206, 1.0
        %v2239 = vadd.f32 %v2207, 1.0
        %v2240 = vadd.f32 %v2208, 1.0
        %v2241 = vadd.f32 %v2209, 1.0
        %v2242 = vadd.f32 %v2210, 1.0
        %v2243 = vadd.f32 %v2211, 1.0
        %v2244 = vadd.f32 %v2212, 1.0
        %v2245 = vadd.f32 %v2213, 1.0
        %v2246 = vadd.f32 %v2214, 1.0
        %v2247 = vadd.f32 %v2215, 1.0
        %v2248 = vadd.f32 %v2216, 1.0
        %v2249 = vmul.f32 %v2153, %v2217
        %v2250 = vmul.f32 %v2154, %v2218
        %v2251 = vmul.f32 %v2155, %v2219
        %v2252 = vmul.f32 %v2156, %v2220
        %v2253 = vmul.f32 %v2157, %v2221
        %v2254 = vmul.f32 %v2158, %v2222
        %v2255 = vmul.f32 %v2159, %v2223
        %v2256 = vmul.f32 %v2160, %v2224
        %v2257 = vmul.f32 %v2161, %v2225
        %v2258 = vmul.f32 %v2162, %v2226
        %v2259 = vmul.f32 %v2163, %v2227
        %v2260 = vmul.f32 %v2164, %v2228
        %v2261 = vmul.f32 %v2165, %v2229
        %v2262 = vmul.f32 %v2166, %v2230
        %v2263 = vmul.f32 %v2167, %v2231
        %v2264 = vmul.f32 %v2168, %v2232
        %v2265 = vmul.f32 %v2169, %v2233
        %v2266 = vmul.f32 %v2170, %v2234
        %v2267 = vmul.f32 %v2171, %v2235
        %v2268 = vmul.f32 %v2172, %v2236
        %v2269 = vmul.f32 %v2173, %v2237
        %v2270 = vmul.f32 %v2174, %v2238
        %v2271 = vmul.f32 %v2175, %v2239
        %v2272 = vmul.f32 %v2176, %v2240
        %v2273 = vmul.f32 %v2177, %v2241
        %v2274 = vmul.f32 %v2178, %v2242
        %v2275 = vmul.f32 %v2179, %v2243
        %v2276 = vmul.f32 %v2180, %v2244
        %v2277 = vmul.f32 %v2181, %v2245
        %v2278 = vmul.f32 %v2182, %v2246
        %v2279 = vmul.f32 %v2183, %v2247
        %v2280 = vmul.f32 %v2184, %v2248
        %v2281 = vlaneseq
        %v2282 = vand.u32 %v2281, 127
        %vm2283 = vcmp.lt.s32.totalorder %v2282, 8
        %v2284 = vsel %vm2283, 1, 0
        %vm2285 = vcmp.eq.s32.totalorder %v2284, 1
        %v2286 = vsel %vm2285, %v298, %v2249
        %v2287 = vsel %vm2285, %v299, %v2250
        %v2288 = vsel %vm2285, %v300, %v2251
        %v2289 = vsel %vm2285, %v301, %v2252
        %v2290 = vsel %vm2285, %v302, %v2253
        %v2291 = vsel %vm2285, %v303, %v2254
        %v2292 = vsel %vm2285, %v304, %v2255
        %v2293 = vsel %vm2285, %v305, %v2256
        %v2294 = vsel %vm2285, %v306, %v2257
        %v2295 = vsel %vm2285, %v307, %v2258
        %v2296 = vsel %vm2285, %v308, %v2259
        %v2297 = vsel %vm2285, %v309, %v2260
        %v2298 = vsel %vm2285, %v310, %v2261
        %v2299 = vsel %vm2285, %v311, %v2262
        %v2300 = vsel %vm2285, %v312, %v2263
        %v2301 = vsel %vm2285, %v313, %v2264
        %v2302 = vsel %vm2285, %v314, %v2265
        %v2303 = vsel %vm2285, %v315, %v2266
        %v2304 = vsel %vm2285, %v316, %v2267
        %v2305 = vsel %vm2285, %v317, %v2268
        %v2306 = vsel %vm2285, %v318, %v2269
        %v2307 = vsel %vm2285, %v319, %v2270
        %v2308 = vsel %vm2285, %v320, %v2271
        %v2309 = vsel %vm2285, %v321, %v2272
        %v2310 = vsel %vm2285, %v322, %v2273
        %v2311 = vsel %vm2285, %v323, %v2274
        %v2312 = vsel %vm2285, %v324, %v2275
        %v2313 = vsel %vm2285, %v325, %v2276
        %v2314 = vsel %vm2285, %v326, %v2277
        %v2315 = vsel %vm2285, %v327, %v2278
        %v2316 = vsel %vm2285, %v328, %v2279
        %v2317 = vsel %vm2285, %v329, %v2280
        %2318 = vst.msk [vmem:[%s296] sm:$0xff] %vm354, %v2286
        %2319 = vst.msk [vmem:[%s296 + $0x8] sm:$0xff] %vm354, %v2287
        %2320 = vst.msk [vmem:[%s296 + $0x10] sm:$0xff] %vm354, %v2288
        %2321 = vst.msk [vmem:[%s296 + $0x18] sm:$0xff] %vm354, %v2289
        %2322 = vst.msk [vmem:[%s296 + $0x20] sm:$0xff] %vm354, %v2290
        %2323 = vst.msk [vmem:[%s296 + $0x28] sm:$0xff] %vm354, %v2291
        %2324 = vst.msk [vmem:[%s296 + $0x30] sm:$0xff] %vm354, %v2292
        %2325 = vst.msk [vmem:[%s296 + $0x38] sm:$0xff] %vm354, %v2293
        %2326 = vst.msk [vmem:[%s296 + $0x40] sm:$0xff] %vm354, %v2294
        %2327 = vst.msk [vmem:[%s296 + $0x48] sm:$0xff] %vm354, %v2295
        %2328 = vst.msk [vmem:[%s296 + $0x50] sm:$0xff] %vm354, %v2296
        %2329 = vst.msk [vmem:[%s296 + $0x58] sm:$0xff] %vm354, %v2297
        %2330 = vst.msk [vmem:[%s296 + $0x60] sm:$0xff] %vm354, %v2298
        %2331 = vst.msk [vmem:[%s296 + $0x68] sm:$0xff] %vm354, %v2299
        %2332 = vst.msk [vmem:[%s296 + $0x70] sm:$0xff] %vm354, %v2300
        %2333 = vst.msk [vmem:[%s296 + $0x78] sm:$0xff] %vm354, %v2301
        %2334 = vst.msk [vmem:[%s296 + $0x80] sm:$0xff] %vm354, %v2302
        %2335 = vst.msk [vmem:[%s296 + $0x88] sm:$0xff] %vm354, %v2303
        %2336 = vst.msk [vmem:[%s296 + $0x90] sm:$0xff] %vm354, %v2304
        %2337 = vst.msk [vmem:[%s296 + $0x98] sm:$0xff] %vm354, %v2305
        %2338 = vst.msk [vmem:[%s296 + $0xa0] sm:$0xff] %vm354, %v2306
        %2339 = vst.msk [vmem:[%s296 + $0xa8] sm:$0xff] %vm354, %v2307
        %2340 = vst.msk [vmem:[%s296 + $0xb0] sm:$0xff] %vm354, %v2308
        %2341 = vst.msk [vmem:[%s296 + $0xb8] sm:$0xff] %vm354, %v2309
        %2342 = vst.msk [vmem:[%s296 + $0xc0] sm:$0xff] %vm354, %v2310
        %2343 = vst.msk [vmem:[%s296 + $0xc8] sm:$0xff] %vm354, %v2311
        %2344 = vst.msk [vmem:[%s296 + $0xd0] sm:$0xff] %vm354, %v2312
        %2345 = vst.msk [vmem:[%s296 + $0xd8] sm:$0xff] %vm354, %v2313
        %2346 = vst.msk [vmem:[%s296 + $0xe0] sm:$0xff] %vm354, %v2314
        %2347 = vst.msk [vmem:[%s296 + $0xe8] sm:$0xff] %vm354, %v2315
        %2348 = vst.msk [vmem:[%s296 + $0xf0] sm:$0xff] %vm354, %v2316
        %2349 = vst.msk [vmem:[%s296 + $0xf8] sm:$0xff] %vm354, %v2317
        %s2350 = sand.u32 %s184, 1
        %s2351 = scalar_lea.sflag [#allocation5], %s2350
        %s2352 = sand.u32 %s184, 1
        %s2353 = smul.addr %s2352, 256
        %s2354 = scalar_lea.vmem [#allocation6], %s2353
        // Predicated region
        $region53: #{tpu_custom_call.1} parent=47 // pred_check
          %p2355 = pneg %p194
        $region54: #{tpu_custom_call.1} parent=47 // pred_check_branch
          %2357 = sbr.rel (%p2355) target = $region56
        $region55: #{tpu_custom_call.1} parent=47 // pred_region
          %s2359 = ssub.s32 4096, 4096
          %2360 = vsyncadd %s2351, %s2359
          %s2361 = smul.addr %s24, 32
          %s2362 = smul.addr %s2361, 128
          %s2363 = scalar_lea.hbm %s7, %s2362
          %s2364 = sshll.u32 %s2354, 4
          %s2365 = int_to_ptr.vmem [resolvable:$true] %s2364
          %2370 = dma.vmem_to_hbm [thread:$0]  %s2365, 4096, %s2363, %s2351, 128, 128, 8
        $region56: #{tpu_custom_call.1} parent=47 // pred_fallthru
          _
      $region48: #{tpu_custom_call.1} parent=5 // pred_fallthru
        _
      %p2371 = scmp.le.s32.totalorder 2, %s19
      // Predicated region
      $region57: #{tpu_custom_call.1} parent=5 // pred_check
        %p2372 = pneg %p2371
      $region58: #{tpu_custom_call.1} parent=5 // pred_check_branch
        %2374 = sbr.rel (%p2372) target = $region60
      $region59: #{tpu_custom_call.1} parent=5 // pred_region
        %s2375 = ssub.s32 %s19, 2
        // Predicated region
        $region61: #{tpu_custom_call.1} parent=59 // pred_check
          %p2376 = pneg %p200
        $region62: #{tpu_custom_call.1} parent=59 // pred_check_branch
          %2378 = sbr.rel (%p2376) target = $region64
        $region63: #{tpu_custom_call.1} parent=59 // pred_region
          %s2379 = sand.u32 %s185, 1
          %s2380 = scalar_lea.sflag [#allocation5], %s2379
          %s2381 = sand.u32 %s185, 1
          %s2382 = smul.addr %s2381, 256
          %s2383 = scalar_lea.vmem [#allocation6], %s2382
          %2384 = dma.done %s2380, 4096
        $region64: #{tpu_custom_call.1} parent=59 // pred_fallthru
          _
      $region60: #{tpu_custom_call.1} parent=5 // pred_fallthru
        _
    $region6: #{tpu_custom_call.1} parent=1 // loop_footer
      %s23 = sadd.s32 1, %s19
    $region7: #{tpu_custom_call.1} parent=1 // loop_footer_branch
      %18 = sbr.rel target = $region3
    $region8: #{tpu_custom_call.1} parent=1 // loop_exit
      _
    %2385 = vsyncpa [#allocation4], 1
    %s2386 = scalar_lea.sflag [#allocation4], 1
    %2387 = vsyncpa %s2386, 1
    %2388 = vsyncpa [#allocation5], 1
    %s2389 = scalar_lea.sflag [#allocation5], 1
    %2390 = vsyncpa %s2389, 1

</llo_original>
